<compile_context>
chip_gen: v6e
topology: v6e:2x2x1
jax: 0.10.0
libtpu: 0.0.40
codegen_flags: <defaults>
</compile_context>

<pallas_src>
import jax
import jax.numpy as jnp
from jax import lax
from jax.experimental import pallas as pl
from jax.experimental.pallas import tpu as pltpu

INPUT_SIZE = 100
HIDDEN_SIZE = 256
NUM_LAYERS = 2
B_TILE = 8           # sublane tile; also the per-TensorCore batch slice


def rnn_kernel(tlen_ref, x_ref, w_ih0_ref, w_hh0_ref, b0_ref,
               w_ih1_ref, w_hh1_ref, b1_ref,
               out_ref, xw0_scr, h1_scr, h2_scr):
    chunk = pl.program_id(1)
    n_chunks = pl.num_programs(1)
    b_tile, h = h1_scr.shape
    t_chunk = x_ref.shape[0] // b_tile

    @pl.when(chunk == 0)
    def _():
        # h0 = zeros(num_layers, B, H)
        h1_scr[...] = jnp.zeros_like(h1_scr)
        h2_scr[...] = jnp.zeros_like(h2_scr)

    # ---- chunk-level work (off the recurrent critical path) ----------------
    # Hoisted layer-0 input projection (+ bias): one matmul with
    # M = T_CHUNK * B_TILE rows instead of T_CHUNK matmuls with M = 8 rows.
    x_flat = x_ref[...].astype(jnp.bfloat16)            # (T_CHUNK*B_TILE, I_pad)
    xw0_scr[...] = (
        jnp.dot(x_flat, w_ih0_ref[...], preferred_element_type=jnp.float32)
        + b0_ref[...])

    # Hoisted (per-chunk, not per-step) weight loads and bias broadcast.
    w_hh0 = w_hh0_ref[...]
    w_ih1 = w_ih1_ref[...]
    w_hh1 = w_hh1_ref[...]
    b1b = jnp.broadcast_to(b1_ref[...], (b_tile, h))

    # ---- recurrence ---------------------------------------------------------
    def step(i, carry):
        h1, h2 = carry                                  # f32 (B_TILE, H)
        row = pl.multiple_of(i * b_tile, b_tile)
        xw0_t = xw0_scr[pl.ds(row, b_tile), :]          # x_t @ W_ih0^T + b0
        h1_new = jnp.tanh(
            xw0_t + jnp.dot(h1.astype(jnp.bfloat16), w_hh0,
                            preferred_element_type=jnp.float32))
        # layer 1: two independent dots (no concat); results accumulate.
        h2_new = jnp.tanh(
            jnp.dot(h1_new.astype(jnp.bfloat16), w_ih1,
                    preferred_element_type=jnp.float32)
            + jnp.dot(h2.astype(jnp.bfloat16), w_hh1,
                      preferred_element_type=jnp.float32)
            + b1b)
        return h1_new, h2_new

    t_len = tlen_ref[0]                 # actual (unpadded) sequence length
    base = chunk * t_chunk
    is_full = (base + t_chunk) <= t_len

    @pl.when(is_full)
    def _():
        # fast path: unmasked, partially unrolled time loop
        h1, h2 = lax.fori_loop(0, t_chunk, step,
                               (h1_scr[...], h2_scr[...]),
                               unroll=min(8, t_chunk))
        h1_scr[...] = h1
        h2_scr[...] = h2

    @pl.when(jnp.logical_not(is_full))
    def _():
        # cold path: only the final partial chunk pays for masking
        def masked_step(i, carry):
            h1, h2 = carry
            h1_new, h2_new = step(i, carry)
            valid = (base + i) < t_len
            return (jnp.where(valid, h1_new, h1),
                    jnp.where(valid, h2_new, h2))
        h1, h2 = lax.fori_loop(0, t_chunk, masked_step,
                               (h1_scr[...], h2_scr[...]))
        h1_scr[...] = h1
        h2_scr[...] = h2

    @pl.when(chunk == n_chunks - 1)
    def _():
        out_ref[...] = h2_scr[...]      # lane-dense (B_TILE, 256) f32


def rnn_forward(x, params, *, t_chunk=64):
    """x: (B, T, INPUT_SIZE) float32 -> logits (B,) float32 (eval-mode RNN)."""
    B, T, I = x.shape
    H = HIDDEN_SIZE

    I_pad = ((I + 127) // 128) * 128                    # 100 -> 128
    B_pad = ((B + B_TILE - 1) // B_TILE) * B_TILE       # sublane-align batch
    n_btiles = B_pad // B_TILE
    T_CHUNK = min(t_chunk, T)
    num_chunks = -(-T // T_CHUNK)
    T_pad = num_chunks * T_CHUNK

    # (B, T, I) -> (n_btiles, T_pad*B_TILE, I_pad), f32, zero-padded.
    # Rows [t*B_TILE : (t+1)*B_TILE] of batch-tile b hold timestep t.
    x_tbi = jnp.transpose(x, (1, 0, 2)).astype(jnp.float32)
    x_tbi = jnp.pad(x_tbi, ((0, T_pad - T), (0, B_pad - B), (0, I_pad - I)))
    x_arr = x_tbi.reshape(T_pad, n_btiles, B_TILE, I_pad)
    x_arr = jnp.transpose(x_arr, (1, 0, 2, 3)).reshape(
        n_btiles, T_pad * B_TILE, I_pad)

    # Pre-transposed weights (bf16 MXU operands) and folded f32 biases.
    w_ih0 = jnp.pad(params["w_ih0"].T, ((0, I_pad - I), (0, 0))
                    ).astype(jnp.bfloat16)              # (I_pad, H)
    w_hh0 = params["w_hh0"].T.astype(jnp.bfloat16)      # (H, H)
    w_ih1 = params["w_ih1"].T.astype(jnp.bfloat16)      # (H, H)
    w_hh1 = params["w_hh1"].T.astype(jnp.bfloat16)      # (H, H)
    b0 = (params["b_ih0"] + params["b_hh0"]).reshape(1, H).astype(jnp.float32)
    b1 = (params["b_ih1"] + params["b_hh1"]).reshape(1, H).astype(jnp.float32)

    t_len = jnp.array([T], dtype=jnp.int32)

    h2_final = pl.pallas_call(
        rnn_kernel,
        out_shape=jax.ShapeDtypeStruct((n_btiles, B_TILE, H), jnp.float32),
        grid_spec=pltpu.PrefetchScalarGridSpec(
            num_scalar_prefetch=1,
            grid=(n_btiles, num_chunks),
            in_specs=[
                pl.BlockSpec((None, T_CHUNK * B_TILE, I_pad),
                             lambda b, c, tl: (b, c, 0)),
                pl.BlockSpec((I_pad, H), lambda b, c, tl: (0, 0)),
                pl.BlockSpec((H, H), lambda b, c, tl: (0, 0)),
                pl.BlockSpec((1, H), lambda b, c, tl: (0, 0)),
                pl.BlockSpec((H, H), lambda b, c, tl: (0, 0)),
                pl.BlockSpec((H, H), lambda b, c, tl: (0, 0)),
                pl.BlockSpec((1, H), lambda b, c, tl: (0, 0)),
            ],
            out_specs=pl.BlockSpec((None, B_TILE, H),
                                   lambda b, c, tl: (b, 0, 0)),
            scratch_shapes=[
                pltpu.VMEM((T_CHUNK * B_TILE, H), jnp.float32),  # x@W_ih0 + b0
                pltpu.VMEM((B_TILE, H), jnp.float32),            # layer-0 hidden
                pltpu.VMEM((B_TILE, H), jnp.float32),            # layer-1 hidden
            ],
        ),
        compiler_params=pltpu.CompilerParams(
            # batch tiles independent (fills v7x's 2nd core); time is sequential
            dimension_semantics=("parallel", "arbitrary"),
        ),
    )(t_len, x_arr, w_ih0, w_hh0, b0, w_ih1, w_hh1, b1)

    # fc on the last timestep of the top layer, done in plain JAX (f32).
    h2 = h2_final.reshape(B_pad, H)[:B]                 # (B, H)
    logits = h2 @ params["w_fc"].T + params["b_fc"]     # (B, 1)
    return logits[:, 0]                                 # squeeze(1)


def make_params(key):
    """Deterministic init matching PyTorch shapes (uniform(-1/sqrt(H), 1/sqrt(H)))."""
    H, I = HIDDEN_SIZE, INPUT_SIZE
    k = 1.0 / jnp.sqrt(jnp.float32(H))
    keys = jax.random.split(key, 10)
    u = lambda kk, shape: jax.random.uniform(kk, shape, jnp.float32, -k, k)
    return {
        "w_ih0": u(keys[0], (H, I)),
        "w_hh0": u(keys[1], (H, H)),
        "b_ih0": u(keys[2], (H,)),
        "b_hh0": u(keys[3], (H,)),
        "w_ih1": u(keys[4], (H, H)),
        "w_hh1": u(keys[5], (H, H)),
        "b_ih1": u(keys[6], (H,)),
        "b_hh1": u(keys[7], (H,)),
        "w_fc": u(keys[8], (1, H)),
        "b_fc": u(keys[9], (1,)),
    }


def ref_forward(x, p):
    """Pure-JAX f32 reference of the PyTorch forward (eval mode)."""
    B, T, _ = x.shape
    h1 = jnp.zeros((B, HIDDEN_SIZE), jnp.float32)
    h2 = jnp.zeros((B, HIDDEN_SIZE), jnp.float32)
    for t in range(T):
        xt = x[:, t, :]
        h1 = jnp.tanh(xt @ p["w_ih0"].T + p["b_ih0"] + h1 @ p["w_hh0"].T + p["b_hh0"])
        h2 = jnp.tanh(h1 @ p["w_ih1"].T + p["b_ih1"] + h2 @ p["w_hh1"].T + p["b_hh1"])
    return (h2 @ p["w_fc"].T + p["b_fc"])[:, 0]


if __name__ == "__main__":
    key = jax.random.PRNGKey(0)
    k_x, k_p = jax.random.split(key)

    B, T = 2, 8
    x = jax.random.normal(k_x, (B, T, INPUT_SIZE), jnp.float32)
    params = make_params(k_p)

    y = jax.jit(rnn_forward)(x, params)
    y = jax.block_until_ready(y)

    y_ref = ref_forward(x, params)
    assert y.shape == (B,)
    # bf16 matmul operands perturb results slightly vs. the f32 reference.
    assert jnp.allclose(y, y_ref, rtol=5e-2, atol=5e-2), (y, y_ref)

    print("KERNEL_OK")
</pallas_src>

<mosaic_0001>
module attributes {stable_mosaic.version = 11 : i64} {
  func.func @rnn_kernel(%arg0: i32, %arg1: i32, %arg2: memref<1xi32, #tpu.memory_space<smem>>, %arg3: memref<1x64x128xf32, #tpu.memory_space<vmem>>, %arg4: memref<128x256xbf16, #tpu.memory_space<vmem>>, %arg5: memref<256x256xbf16, #tpu.memory_space<vmem>>, %arg6: memref<1x256xf32, #tpu.memory_space<vmem>>, %arg7: memref<256x256xbf16, #tpu.memory_space<vmem>>, %arg8: memref<256x256xbf16, #tpu.memory_space<vmem>>, %arg9: memref<1x256xf32, #tpu.memory_space<vmem>>, %arg10: memref<1x8x256xf32, #tpu.memory_space<vmem>>, %arg11: memref<64x256xf32, #tpu.memory_space<vmem>>, %arg12: memref<8x256xf32, #tpu.memory_space<vmem>>, %arg13: memref<8x256xf32, #tpu.memory_space<vmem>>) attributes {dimension_semantics = [#tpu.dimension_semantics<parallel>, #tpu.dimension_semantics<arbitrary>], iteration_bounds = array<i64: 1, 1>, scalar_prefetch = 1 : i64, scratch_operands = 3 : i64, tpu.core_type = #tpu.core_type<tc>, window_params = [{transform_indices = @transform_0, window_bounds = array<i64: 1, 64, 128>}, {pipeline_mode = #tpu.pipeline_mode<synchronous>, transform_indices = @transform_1, window_bounds = array<i64: 128, 256>}, {pipeline_mode = #tpu.pipeline_mode<synchronous>, transform_indices = @transform_2, window_bounds = array<i64: 256, 256>}, {pipeline_mode = #tpu.pipeline_mode<synchronous>, transform_indices = @transform_3, window_bounds = array<i64: 1, 256>}, {pipeline_mode = #tpu.pipeline_mode<synchronous>, transform_indices = @transform_4, window_bounds = array<i64: 256, 256>}, {pipeline_mode = #tpu.pipeline_mode<synchronous>, transform_indices = @transform_5, window_bounds = array<i64: 256, 256>}, {pipeline_mode = #tpu.pipeline_mode<synchronous>, transform_indices = @transform_6, window_bounds = array<i64: 1, 256>}, {transform_indices = @transform_7, window_bounds = array<i64: 1, 8, 256>}]} {
    %c0_i32 = arith.constant 0 : i32
    %0 = arith.cmpi eq, %arg1, %c0_i32 : i32
    %1 = arith.extui %0 : i1 to i32
    %c0_i32_0 = arith.constant 0 : i32
    %2 = arith.cmpi ne, %1, %c0_i32_0 : i32
    scf.if %2 {
      %cst_23 = arith.constant 0.000000e+00 : f32
      %30 = vector.broadcast %cst_23 : f32 to vector<8x256xf32>
      %c0_24 = arith.constant 0 : index
      %c0_25 = arith.constant 0 : index
      %31 = vector.load %arg12[%c0_24, %c0_25] : memref<8x256xf32, #tpu.memory_space<vmem>>, vector<8x256xf32>
      tpu.vector_store %arg12[%c0_24, %c0_25], %30 {strides = array<i32>} : memref<8x256xf32, #tpu.memory_space<vmem>>, vector<8x256xf32>,
      %cst_26 = arith.constant 0.000000e+00 : f32
      %32 = vector.broadcast %cst_26 : f32 to vector<8x256xf32>
      %c0_27 = arith.constant 0 : index
      %c0_28 = arith.constant 0 : index
      %33 = vector.load %arg13[%c0_27, %c0_28] : memref<8x256xf32, #tpu.memory_space<vmem>>, vector<8x256xf32>
      tpu.vector_store %arg13[%c0_27, %c0_28], %32 {strides = array<i32>} : memref<8x256xf32, #tpu.memory_space<vmem>>, vector<8x256xf32>,
    } else {
    }
    %c0 = arith.constant 0 : index
    %c0_1 = arith.constant 0 : index
    %c0_2 = arith.constant 0 : index
    %3 = vector.load %arg3[%c0, %c0_1, %c0_2] : memref<1x64x128xf32, #tpu.memory_space<vmem>>, vector<1x64x128xf32>
    %4 = vector.shape_cast %3 : vector<1x64x128xf32> to vector<64x128xf32>
    %5 = arith.truncf %4 : vector<64x128xf32> to vector<64x128xbf16>
    %c0_3 = arith.constant 0 : index
    %c0_4 = arith.constant 0 : index
    %6 = vector.load %arg4[%c0_3, %c0_4] : memref<128x256xbf16, #tpu.memory_space<vmem>>, vector<128x256xbf16>
    %cst = arith.constant dense<0.000000e+00> : vector<64x256xf32>
    %7 = tpu.matmul %5, %6, %cst {dimension_numbers = #tpu.dot_dimension_numbers<[1], [0], [0], [1], [0, 0, 1, 1], [], []>} : vector<64x128xbf16>, vector<128x256xbf16>, vector<64x256xf32> -> vector<64x256xf32>
    %c0_5 = arith.constant 0 : index
    %c0_6 = arith.constant 0 : index
    %8 = vector.load %arg6[%c0_5, %c0_6] : memref<1x256xf32, #tpu.memory_space<vmem>>, vector<1x256xf32>
    %9 = vector.broadcast %8 : vector<1x256xf32> to vector<64x256xf32>
    %10 = arith.addf %7, %9 : vector<64x256xf32>
    %c0_7 = arith.constant 0 : index
    %c0_8 = arith.constant 0 : index
    %11 = vector.load %arg11[%c0_7, %c0_8] : memref<64x256xf32, #tpu.memory_space<vmem>>, vector<64x256xf32>
    tpu.vector_store %arg11[%c0_7, %c0_8], %10 {strides = array<i32>} : memref<64x256xf32, #tpu.memory_space<vmem>>, vector<64x256xf32>,
    %c0_9 = arith.constant 0 : index
    %c0_10 = arith.constant 0 : index
    %12 = vector.load %arg5[%c0_9, %c0_10] : memref<256x256xbf16, #tpu.memory_space<vmem>>, vector<256x256xbf16>
    %c0_11 = arith.constant 0 : index
    %c0_12 = arith.constant 0 : index
    %13 = vector.load %arg7[%c0_11, %c0_12] : memref<256x256xbf16, #tpu.memory_space<vmem>>, vector<256x256xbf16>
    %c0_13 = arith.constant 0 : index
    %c0_14 = arith.constant 0 : index
    %14 = vector.load %arg8[%c0_13, %c0_14] : memref<256x256xbf16, #tpu.memory_space<vmem>>, vector<256x256xbf16>
    %c0_15 = arith.constant 0 : index
    %c0_16 = arith.constant 0 : index
    %15 = vector.load %arg9[%c0_15, %c0_16] : memref<1x256xf32, #tpu.memory_space<vmem>>, vector<1x256xf32>
    %16 = vector.shape_cast %15 : vector<1x256xf32> to vector<1x256xf32>
    %17 = vector.broadcast %16 : vector<1x256xf32> to vector<8x256xf32>
    %c0_17 = arith.constant 0 : index
    %18 = memref.load %arg2[%c0_17] : memref<1xi32, #tpu.memory_space<smem>>
    %c8_i32 = arith.constant 8 : i32
    %19 = arith.muli %arg1, %c8_i32 : i32
    %c8_i32_18 = arith.constant 8 : i32
    %20 = arith.addi %19, %c8_i32_18 : i32
    %21 = arith.cmpi sle, %20, %18 : i32
    %22 = arith.extui %21 : i1 to i32
    %c0_i32_19 = arith.constant 0 : i32
    %23 = arith.cmpi ne, %22, %c0_i32_19 : i32
    scf.if %23 {
      %c0_23 = arith.constant 0 : index
      %c0_24 = arith.constant 0 : index
      %30 = vector.load %arg12[%c0_23, %c0_24] : memref<8x256xf32, #tpu.memory_space<vmem>>, vector<8x256xf32>
      %c0_25 = arith.constant 0 : index
      %c0_26 = arith.constant 0 : index
      %31 = vector.load %arg13[%c0_25, %c0_26] : memref<8x256xf32, #tpu.memory_space<vmem>>, vector<8x256xf32>
      %c0_i32_27 = arith.constant 0 : i32
      %c8_i32_28 = arith.constant 8 : i32
      %32 = arith.muli %c0_i32_27, %c8_i32_28 : i32
      %33 = tpu.assume_multiple %32, 8 : i32
      %34 = arith.index_cast %33 : i32 to index
      %c0_29 = arith.constant 0 : index
      %35 = vector.load %arg11[%34, %c0_29] : memref<64x256xf32, #tpu.memory_space<vmem>>, vector<8x256xf32>
      %36 = arith.truncf %30 : vector<8x256xf32> to vector<8x256xbf16>
      %cst_30 = arith.constant dense<0.000000e+00> : vector<8x256xf32>
      %37 = tpu.matmul %36, %12, %cst_30 {dimension_numbers = #tpu.dot_dimension_numbers<[1], [0], [0], [1], [0, 0, 1, 1], [], []>} : vector<8x256xbf16>, vector<256x256xbf16>, vector<8x256xf32> -> vector<8x256xf32>
      %38 = arith.addf %35, %37 : vector<8x256xf32>
      %39 = math.tanh %38 : vector<8x256xf32>
      %40 = arith.truncf %39 : vector<8x256xf32> to vector<8x256xbf16>
      %cst_31 = arith.constant dense<0.000000e+00> : vector<8x256xf32>
      %41 = tpu.matmul %40, %13, %cst_31 {dimension_numbers = #tpu.dot_dimension_numbers<[1], [0], [0], [1], [0, 0, 1, 1], [], []>} : vector<8x256xbf16>, vector<256x256xbf16>, vector<8x256xf32> -> vector<8x256xf32>
      %42 = arith.truncf %31 : vector<8x256xf32> to vector<8x256xbf16>
      %cst_32 = arith.constant dense<0.000000e+00> : vector<8x256xf32>
      %43 = tpu.matmul %42, %14, %cst_32 {dimension_numbers = #tpu.dot_dimension_numbers<[1], [0], [0], [1], [0, 0, 1, 1], [], []>} : vector<8x256xbf16>, vector<256x256xbf16>, vector<8x256xf32> -> vector<8x256xf32>
      %44 = arith.addf %41, %43 : vector<8x256xf32>
      %45 = arith.addf %44, %17 : vector<8x256xf32>
      %46 = math.tanh %45 : vector<8x256xf32>
      %c1_i32 = arith.constant 1 : i32
      %c8_i32_33 = arith.constant 8 : i32
      %47 = arith.muli %c1_i32, %c8_i32_33 : i32
      %48 = tpu.assume_multiple %47, 8 : i32
      %49 = arith.index_cast %48 : i32 to index
      %c0_34 = arith.constant 0 : index
      %50 = vector.load %arg11[%49, %c0_34] : memref<64x256xf32, #tpu.memory_space<vmem>>, vector<8x256xf32>
      %51 = arith.truncf %39 : vector<8x256xf32> to vector<8x256xbf16>
      %cst_35 = arith.constant dense<0.000000e+00> : vector<8x256xf32>
      %52 = tpu.matmul %51, %12, %cst_35 {dimension_numbers = #tpu.dot_dimension_numbers<[1], [0], [0], [1], [0, 0, 1, 1], [], []>} : vector<8x256xbf16>, vector<256x256xbf16>, vector<8x256xf32> -> vector<8x256xf32>
      %53 = arith.addf %50, %52 : vector<8x256xf32>
      %54 = math.tanh %53 : vector<8x256xf32>
      %55 = arith.truncf %54 : vector<8x256xf32> to vector<8x256xbf16>
      %cst_36 = arith.constant dense<0.000000e+00> : vector<8x256xf32>
      %56 = tpu.matmul %55, %13, %cst_36 {dimension_numbers = #tpu.dot_dimension_numbers<[1], [0], [0], [1], [0, 0, 1, 1], [], []>} : vector<8x256xbf16>, vector<256x256xbf16>, vector<8x256xf32> -> vector<8x256xf32>
      %57 = arith.truncf %46 : vector<8x256xf32> to vector<8x256xbf16>
      %cst_37 = arith.constant dense<0.000000e+00> : vector<8x256xf32>
      %58 = tpu.matmul %57, %14, %cst_37 {dimension_numbers = #tpu.dot_dimension_numbers<[1], [0], [0], [1], [0, 0, 1, 1], [], []>} : vector<8x256xbf16>, vector<256x256xbf16>, vector<8x256xf32> -> vector<8x256xf32>
      %59 = arith.addf %56, %58 : vector<8x256xf32>
      %60 = arith.addf %59, %17 : vector<8x256xf32>
      %61 = math.tanh %60 : vector<8x256xf32>
      %c2_i32 = arith.constant 2 : i32
      %c8_i32_38 = arith.constant 8 : i32
      %62 = arith.muli %c2_i32, %c8_i32_38 : i32
      %63 = tpu.assume_multiple %62, 8 : i32
      %64 = arith.index_cast %63 : i32 to index
      %c0_39 = arith.constant 0 : index
      %65 = vector.load %arg11[%64, %c0_39] : memref<64x256xf32, #tpu.memory_space<vmem>>, vector<8x256xf32>
      %66 = arith.truncf %54 : vector<8x256xf32> to vector<8x256xbf16>
      %cst_40 = arith.constant dense<0.000000e+00> : vector<8x256xf32>
      %67 = tpu.matmul %66, %12, %cst_40 {dimension_numbers = #tpu.dot_dimension_numbers<[1], [0], [0], [1], [0, 0, 1, 1], [], []>} : vector<8x256xbf16>, vector<256x256xbf16>, vector<8x256xf32> -> vector<8x256xf32>
      %68 = arith.addf %65, %67 : vector<8x256xf32>
      %69 = math.tanh %68 : vector<8x256xf32>
      %70 = arith.truncf %69 : vector<8x256xf32> to vector<8x256xbf16>
      %cst_41 = arith.constant dense<0.000000e+00> : vector<8x256xf32>
      %71 = tpu.matmul %70, %13, %cst_41 {dimension_numbers = #tpu.dot_dimension_numbers<[1], [0], [0], [1], [0, 0, 1, 1], [], []>} : vector<8x256xbf16>, vector<256x256xbf16>, vector<8x256xf32> -> vector<8x256xf32>
      %72 = arith.truncf %61 : vector<8x256xf32> to vector<8x256xbf16>
      %cst_42 = arith.constant dense<0.000000e+00> : vector<8x256xf32>
      %73 = tpu.matmul %72, %14, %cst_42 {dimension_numbers = #tpu.dot_dimension_numbers<[1], [0], [0], [1], [0, 0, 1, 1], [], []>} : vector<8x256xbf16>, vector<256x256xbf16>, vector<8x256xf32> -> vector<8x256xf32>
      %74 = arith.addf %71, %73 : vector<8x256xf32>
      %75 = arith.addf %74, %17 : vector<8x256xf32>
      %76 = math.tanh %75 : vector<8x256xf32>
      %c3_i32 = arith.constant 3 : i32
      %c8_i32_43 = arith.constant 8 : i32
      %77 = arith.muli %c3_i32, %c8_i32_43 : i32
      %78 = tpu.assume_multiple %77, 8 : i32
      %79 = arith.index_cast %78 : i32 to index
      %c0_44 = arith.constant 0 : index
      %80 = vector.load %arg11[%79, %c0_44] : memref<64x256xf32, #tpu.memory_space<vmem>>, vector<8x256xf32>
      %81 = arith.truncf %69 : vector<8x256xf32> to vector<8x256xbf16>
      %cst_45 = arith.constant dense<0.000000e+00> : vector<8x256xf32>
      %82 = tpu.matmul %81, %12, %cst_45 {dimension_numbers = #tpu.dot_dimension_numbers<[1], [0], [0], [1], [0, 0, 1, 1], [], []>} : vector<8x256xbf16>, vector<256x256xbf16>, vector<8x256xf32> -> vector<8x256xf32>
      %83 = arith.addf %80, %82 : vector<8x256xf32>
      %84 = math.tanh %83 : vector<8x256xf32>
      %85 = arith.truncf %84 : vector<8x256xf32> to vector<8x256xbf16>
      %cst_46 = arith.constant dense<0.000000e+00> : vector<8x256xf32>
      %86 = tpu.matmul %85, %13, %cst_46 {dimension_numbers = #tpu.dot_dimension_numbers<[1], [0], [0], [1], [0, 0, 1, 1], [], []>} : vector<8x256xbf16>, vector<256x256xbf16>, vector<8x256xf32> -> vector<8x256xf32>
      %87 = arith.truncf %76 : vector<8x256xf32> to vector<8x256xbf16>
      %cst_47 = arith.constant dense<0.000000e+00> : vector<8x256xf32>
      %88 = tpu.matmul %87, %14, %cst_47 {dimension_numbers = #tpu.dot_dimension_numbers<[1], [0], [0], [1], [0, 0, 1, 1], [], []>} : vector<8x256xbf16>, vector<256x256xbf16>, vector<8x256xf32> -> vector<8x256xf32>
      %89 = arith.addf %86, %88 : vector<8x256xf32>
      %90 = arith.addf %89, %17 : vector<8x256xf32>
      %91 = math.tanh %90 : vector<8x256xf32>
      %c4_i32 = arith.constant 4 : i32
      %c8_i32_48 = arith.constant 8 : i32
      %92 = arith.muli %c4_i32, %c8_i32_48 : i32
      %93 = tpu.assume_multiple %92, 8 : i32
      %94 = arith.index_cast %93 : i32 to index
      %c0_49 = arith.constant 0 : index
      %95 = vector.load %arg11[%94, %c0_49] : memref<64x256xf32, #tpu.memory_space<vmem>>, vector<8x256xf32>
      %96 = arith.truncf %84 : vector<8x256xf32> to vector<8x256xbf16>
      %cst_50 = arith.constant dense<0.000000e+00> : vector<8x256xf32>
      %97 = tpu.matmul %96, %12, %cst_50 {dimension_numbers = #tpu.dot_dimension_numbers<[1], [0], [0], [1], [0, 0, 1, 1], [], []>} : vector<8x256xbf16>, vector<256x256xbf16>, vector<8x256xf32> -> vector<8x256xf32>
      %98 = arith.addf %95, %97 : vector<8x256xf32>
      %99 = math.tanh %98 : vector<8x256xf32>
      %100 = arith.truncf %99 : vector<8x256xf32> to vector<8x256xbf16>
      %cst_51 = arith.constant dense<0.000000e+00> : vector<8x256xf32>
      %101 = tpu.matmul %100, %13, %cst_51 {dimension_numbers = #tpu.dot_dimension_numbers<[1], [0], [0], [1], [0, 0, 1, 1], [], []>} : vector<8x256xbf16>, vector<256x256xbf16>, vector<8x256xf32> -> vector<8x256xf32>
      %102 = arith.truncf %91 : vector<8x256xf32> to vector<8x256xbf16>
      %cst_52 = arith.constant dense<0.000000e+00> : vector<8x256xf32>
      %103 = tpu.matmul %102, %14, %cst_52 {dimension_numbers = #tpu.dot_dimension_numbers<[1], [0], [0], [1], [0, 0, 1, 1], [], []>} : vector<8x256xbf16>, vector<256x256xbf16>, vector<8x256xf32> -> vector<8x256xf32>
      %104 = arith.addf %101, %103 : vector<8x256xf32>
      %105 = arith.addf %104, %17 : vector<8x256xf32>
      %106 = math.tanh %105 : vector<8x256xf32>
      %c5_i32 = arith.constant 5 : i32
      %c8_i32_53 = arith.constant 8 : i32
      %107 = arith.muli %c5_i32, %c8_i32_53 : i32
      %108 = tpu.assume_multiple %107, 8 : i32
      %109 = arith.index_cast %108 : i32 to index
      %c0_54 = arith.constant 0 : index
      %110 = vector.load %arg11[%109, %c0_54] : memref<64x256xf32, #tpu.memory_space<vmem>>, vector<8x256xf32>
      %111 = arith.truncf %99 : vector<8x256xf32> to vector<8x256xbf16>
      %cst_55 = arith.constant dense<0.000000e+00> : vector<8x256xf32>
      %112 = tpu.matmul %111, %12, %cst_55 {dimension_numbers = #tpu.dot_dimension_numbers<[1], [0], [0], [1], [0, 0, 1, 1], [], []>} : vector<8x256xbf16>, vector<256x256xbf16>, vector<8x256xf32> -> vector<8x256xf32>
      %113 = arith.addf %110, %112 : vector<8x256xf32>
      %114 = math.tanh %113 : vector<8x256xf32>
      %115 = arith.truncf %114 : vector<8x256xf32> to vector<8x256xbf16>
      %cst_56 = arith.constant dense<0.000000e+00> : vector<8x256xf32>
      %116 = tpu.matmul %115, %13, %cst_56 {dimension_numbers = #tpu.dot_dimension_numbers<[1], [0], [0], [1], [0, 0, 1, 1], [], []>} : vector<8x256xbf16>, vector<256x256xbf16>, vector<8x256xf32> -> vector<8x256xf32>
      %117 = arith.truncf %106 : vector<8x256xf32> to vector<8x256xbf16>
      %cst_57 = arith.constant dense<0.000000e+00> : vector<8x256xf32>
      %118 = tpu.matmul %117, %14, %cst_57 {dimension_numbers = #tpu.dot_dimension_numbers<[1], [0], [0], [1], [0, 0, 1, 1], [], []>} : vector<8x256xbf16>, vector<256x256xbf16>, vector<8x256xf32> -> vector<8x256xf32>
      %119 = arith.addf %116, %118 : vector<8x256xf32>
      %120 = arith.addf %119, %17 : vector<8x256xf32>
      %121 = math.tanh %120 : vector<8x256xf32>
      %c6_i32 = arith.constant 6 : i32
      %c8_i32_58 = arith.constant 8 : i32
      %122 = arith.muli %c6_i32, %c8_i32_58 : i32
      %123 = tpu.assume_multiple %122, 8 : i32
      %124 = arith.index_cast %123 : i32 to index
      %c0_59 = arith.constant 0 : index
      %125 = vector.load %arg11[%124, %c0_59] : memref<64x256xf32, #tpu.memory_space<vmem>>, vector<8x256xf32>
      %126 = arith.truncf %114 : vector<8x256xf32> to vector<8x256xbf16>
      %cst_60 = arith.constant dense<0.000000e+00> : vector<8x256xf32>
      %127 = tpu.matmul %126, %12, %cst_60 {dimension_numbers = #tpu.dot_dimension_numbers<[1], [0], [0], [1], [0, 0, 1, 1], [], []>} : vector<8x256xbf16>, vector<256x256xbf16>, vector<8x256xf32> -> vector<8x256xf32>
      %128 = arith.addf %125, %127 : vector<8x256xf32>
      %129 = math.tanh %128 : vector<8x256xf32>
      %130 = arith.truncf %129 : vector<8x256xf32> to vector<8x256xbf16>
      %cst_61 = arith.constant dense<0.000000e+00> : vector<8x256xf32>
      %131 = tpu.matmul %130, %13, %cst_61 {dimension_numbers = #tpu.dot_dimension_numbers<[1], [0], [0], [1], [0, 0, 1, 1], [], []>} : vector<8x256xbf16>, vector<256x256xbf16>, vector<8x256xf32> -> vector<8x256xf32>
      %132 = arith.truncf %121 : vector<8x256xf32> to vector<8x256xbf16>
      %cst_62 = arith.constant dense<0.000000e+00> : vector<8x256xf32>
      %133 = tpu.matmul %132, %14, %cst_62 {dimension_numbers = #tpu.dot_dimension_numbers<[1], [0], [0], [1], [0, 0, 1, 1], [], []>} : vector<8x256xbf16>, vector<256x256xbf16>, vector<8x256xf32> -> vector<8x256xf32>
      %134 = arith.addf %131, %133 : vector<8x256xf32>
      %135 = arith.addf %134, %17 : vector<8x256xf32>
      %136 = math.tanh %135 : vector<8x256xf32>
      %c7_i32 = arith.constant 7 : i32
      %c8_i32_63 = arith.constant 8 : i32
      %137 = arith.muli %c7_i32, %c8_i32_63 : i32
      %138 = tpu.assume_multiple %137, 8 : i32
      %139 = arith.index_cast %138 : i32 to index
      %c0_64 = arith.constant 0 : index
      %140 = vector.load %arg11[%139, %c0_64] : memref<64x256xf32, #tpu.memory_space<vmem>>, vector<8x256xf32>
      %141 = arith.truncf %129 : vector<8x256xf32> to vector<8x256xbf16>
      %cst_65 = arith.constant dense<0.000000e+00> : vector<8x256xf32>
      %142 = tpu.matmul %141, %12, %cst_65 {dimension_numbers = #tpu.dot_dimension_numbers<[1], [0], [0], [1], [0, 0, 1, 1], [], []>} : vector<8x256xbf16>, vector<256x256xbf16>, vector<8x256xf32> -> vector<8x256xf32>
      %143 = arith.addf %140, %142 : vector<8x256xf32>
      %144 = math.tanh %143 : vector<8x256xf32>
      %145 = arith.truncf %144 : vector<8x256xf32> to vector<8x256xbf16>
      %cst_66 = arith.constant dense<0.000000e+00> : vector<8x256xf32>
      %146 = tpu.matmul %145, %13, %cst_66 {dimension_numbers = #tpu.dot_dimension_numbers<[1], [0], [0], [1], [0, 0, 1, 1], [], []>} : vector<8x256xbf16>, vector<256x256xbf16>, vector<8x256xf32> -> vector<8x256xf32>
      %147 = arith.truncf %136 : vector<8x256xf32> to vector<8x256xbf16>
      %cst_67 = arith.constant dense<0.000000e+00> : vector<8x256xf32>
      %148 = tpu.matmul %147, %14, %cst_67 {dimension_numbers = #tpu.dot_dimension_numbers<[1], [0], [0], [1], [0, 0, 1, 1], [], []>} : vector<8x256xbf16>, vector<256x256xbf16>, vector<8x256xf32> -> vector<8x256xf32>
      %149 = arith.addf %146, %148 : vector<8x256xf32>
      %150 = arith.addf %149, %17 : vector<8x256xf32>
      %151 = math.tanh %150 : vector<8x256xf32>
      %c8_i32_68 = arith.constant 8 : i32
      %c0_69 = arith.constant 0 : index
      %c0_70 = arith.constant 0 : index
      %152 = vector.load %arg12[%c0_69, %c0_70] : memref<8x256xf32, #tpu.memory_space<vmem>>, vector<8x256xf32>
      tpu.vector_store %arg12[%c0_69, %c0_70], %144 {strides = array<i32>} : memref<8x256xf32, #tpu.memory_space<vmem>>, vector<8x256xf32>,
      %c0_71 = arith.constant 0 : index
      %c0_72 = arith.constant 0 : index
      %153 = vector.load %arg13[%c0_71, %c0_72] : memref<8x256xf32, #tpu.memory_space<vmem>>, vector<8x256xf32>
      tpu.vector_store %arg13[%c0_71, %c0_72], %151 {strides = array<i32>} : memref<8x256xf32, #tpu.memory_space<vmem>>, vector<8x256xf32>,
    } else {
    }
    %true = arith.constant true
    %24 = arith.xori %21, %true : i1
    %25 = arith.extui %24 : i1 to i32
    %c0_i32_20 = arith.constant 0 : i32
    %26 = arith.cmpi ne, %25, %c0_i32_20 : i32
    scf.if %26 {
      %c0_23 = arith.constant 0 : index
      %c0_24 = arith.constant 0 : index
      %30 = vector.load %arg12[%c0_23, %c0_24] : memref<8x256xf32, #tpu.memory_space<vmem>>, vector<8x256xf32>
      %c0_25 = arith.constant 0 : index
      %c0_26 = arith.constant 0 : index
      %31 = vector.load %arg13[%c0_25, %c0_26] : memref<8x256xf32, #tpu.memory_space<vmem>>, vector<8x256xf32>
      %c0_i32_27 = arith.constant 0 : i32
      %c8_i32_28 = arith.constant 8 : i32
      %32 = arith.addi %c0_i32_27, %c8_i32_28 : i32
      %c1_i32 = arith.constant 1 : i32
      %33:2 = scf.for %arg14 = %c0_i32_27 to %32 step %c1_i32 iter_args(%arg15 = %30, %arg16 = %31) -> (vector<8x256xf32>, vector<8x256xf32>)  : i32 {
        %c8_i32_34 = arith.constant 8 : i32
        %36 = arith.muli %arg14, %c8_i32_34 : i32
        %37 = tpu.assume_multiple %36, 8 : i32
        %38 = arith.index_cast %37 : i32 to index
        %c0_35 = arith.constant 0 : index
        %39 = vector.load %arg11[%38, %c0_35] : memref<64x256xf32, #tpu.memory_space<vmem>>, vector<8x256xf32>
        %40 = arith.truncf %arg15 : vector<8x256xf32> to vector<8x256xbf16>
        %cst_36 = arith.constant dense<0.000000e+00> : vector<8x256xf32>
        %41 = tpu.matmul %40, %12, %cst_36 {dimension_numbers = #tpu.dot_dimension_numbers<[1], [0], [0], [1], [0, 0, 1, 1], [], []>} : vector<8x256xbf16>, vector<256x256xbf16>, vector<8x256xf32> -> vector<8x256xf32>
        %42 = arith.addf %39, %41 : vector<8x256xf32>
        %43 = math.tanh %42 : vector<8x256xf32>
        %44 = arith.truncf %43 : vector<8x256xf32> to vector<8x256xbf16>
        %cst_37 = arith.constant dense<0.000000e+00> : vector<8x256xf32>
        %45 = tpu.matmul %44, %13, %cst_37 {dimension_numbers = #tpu.dot_dimension_numbers<[1], [0], [0], [1], [0, 0, 1, 1], [], []>} : vector<8x256xbf16>, vector<256x256xbf16>, vector<8x256xf32> -> vector<8x256xf32>
        %46 = arith.truncf %arg16 : vector<8x256xf32> to vector<8x256xbf16>
        %cst_38 = arith.constant dense<0.000000e+00> : vector<8x256xf32>
        %47 = tpu.matmul %46, %14, %cst_38 {dimension_numbers = #tpu.dot_dimension_numbers<[1], [0], [0], [1], [0, 0, 1, 1], [], []>} : vector<8x256xbf16>, vector<256x256xbf16>, vector<8x256xf32> -> vector<8x256xf32>
        %48 = arith.addf %45, %47 : vector<8x256xf32>
        %49 = arith.addf %48, %17 : vector<8x256xf32>
        %50 = math.tanh %49 : vector<8x256xf32>
        %51 = arith.addi %19, %arg14 : i32
        %52 = arith.cmpi slt, %51, %18 : i32
        %53 = arith.select %52, %43, %arg15 : vector<8x256xf32>
        %54 = arith.select %52, %50, %arg16 : vector<8x256xf32>
        scf.yield %53, %54 : vector<8x256xf32>, vector<8x256xf32>
      }
      %c8_i32_29 = arith.constant 8 : i32
      %c0_30 = arith.constant 0 : index
      %c0_31 = arith.constant 0 : index
      %34 = vector.load %arg12[%c0_30, %c0_31] : memref<8x256xf32, #tpu.memory_space<vmem>>, vector<8x256xf32>
      tpu.vector_store %arg12[%c0_30, %c0_31], %33#0 {strides = array<i32>} : memref<8x256xf32, #tpu.memory_space<vmem>>, vector<8x256xf32>,
      %c0_32 = arith.constant 0 : index
      %c0_33 = arith.constant 0 : index
      %35 = vector.load %arg13[%c0_32, %c0_33] : memref<8x256xf32, #tpu.memory_space<vmem>>, vector<8x256xf32>
      tpu.vector_store %arg13[%c0_32, %c0_33], %33#1 {strides = array<i32>} : memref<8x256xf32, #tpu.memory_space<vmem>>, vector<8x256xf32>,
    } else {
    }
    %c0_i32_21 = arith.constant 0 : i32
    %27 = arith.cmpi eq, %arg1, %c0_i32_21 : i32
    %28 = arith.extui %27 : i1 to i32
    %c0_i32_22 = arith.constant 0 : i32
    %29 = arith.cmpi ne, %28, %c0_i32_22 : i32
    scf.if %29 {
      %c0_23 = arith.constant 0 : index
      %c0_24 = arith.constant 0 : index
      %30 = vector.load %arg13[%c0_23, %c0_24] : memref<8x256xf32, #tpu.memory_space<vmem>>, vector<8x256xf32>
      %c0_25 = arith.constant 0 : index
      %c0_26 = arith.constant 0 : index
      %c0_27 = arith.constant 0 : index
      %31 = vector.load %arg10[%c0_25, %c0_26, %c0_27] : memref<1x8x256xf32, #tpu.memory_space<vmem>>, vector<1x8x256xf32>
      %32 = vector.shape_cast %31 : vector<1x8x256xf32> to vector<8x256xf32>
      %33 = vector.shape_cast %30 : vector<8x256xf32> to vector<1x8x256xf32>
      tpu.vector_store %arg10[%c0_25, %c0_26, %c0_27], %33 {strides = array<i32>} : memref<1x8x256xf32, #tpu.memory_space<vmem>>, vector<1x8x256xf32>,
    } else {
    }
    return
  }
  func.func @transform_0(%arg0: i32, %arg1: i32, %arg2: memref<1xi32, #tpu.memory_space<smem>>) -> (i32, i32, i32) {
    %c0_i32 = arith.constant 0 : i32
    %c0_i32_0 = arith.constant 0 : i32
    return %arg0, %arg1, %c0_i32 : i32, i32, i32
  }
  func.func @transform_1(%arg0: i32, %arg1: i32, %arg2: memref<1xi32, #tpu.memory_space<smem>>) -> (i32, i32) {
    %c0_i32 = arith.constant 0 : i32
    %c0_i32_0 = arith.constant 0 : i32
    %c0_i32_1 = arith.constant 0 : i32
    return %c0_i32, %c0_i32_0 : i32, i32
  }
  func.func @transform_2(%arg0: i32, %arg1: i32, %arg2: memref<1xi32, #tpu.memory_space<smem>>) -> (i32, i32) {
    %c0_i32 = arith.constant 0 : i32
    %c0_i32_0 = arith.constant 0 : i32
    %c0_i32_1 = arith.constant 0 : i32
    return %c0_i32, %c0_i32_0 : i32, i32
  }
  func.func @transform_3(%arg0: i32, %arg1: i32, %arg2: memref<1xi32, #tpu.memory_space<smem>>) -> (i32, i32) {
    %c0_i32 = arith.constant 0 : i32
    %c0_i32_0 = arith.constant 0 : i32
    %c0_i32_1 = arith.constant 0 : i32
    return %c0_i32, %c0_i32_0 : i32, i32
  }
  func.func @transform_4(%arg0: i32, %arg1: i32, %arg2: memref<1xi32, #tpu.memory_space<smem>>) -> (i32, i32) {
    %c0_i32 = arith.constant 0 : i32
    %c0_i32_0 = arith.constant 0 : i32
    %c0_i32_1 = arith.constant 0 : i32
    return %c0_i32, %c0_i32_0 : i32, i32
  }
  func.func @transform_5(%arg0: i32, %arg1: i32, %arg2: memref<1xi32, #tpu.memory_space<smem>>) -> (i32, i32) {
    %c0_i32 = arith.constant 0 : i32
    %c0_i32_0 = arith.constant 0 : i32
    %c0_i32_1 = arith.constant 0 : i32
    return %c0_i32, %c0_i32_0 : i32, i32
  }
  func.func @transform_6(%arg0: i32, %arg1: i32, %arg2: memref<1xi32, #tpu.memory_space<smem>>) -> (i32, i32) {
    %c0_i32 = arith.constant 0 : i32
    %c0_i32_0 = arith.constant 0 : i32
    %c0_i32_1 = arith.constant 0 : i32
    return %c0_i32, %c0_i32_0 : i32, i32
  }
  func.func @transform_7(%arg0: i32, %arg1: i32, %arg2: memref<1xi32, #tpu.memory_space<smem>>) -> (i32, i32, i32) {
    %c0_i32 = arith.constant 0 : i32
    %c0_i32_0 = arith.constant 0 : i32
    %c0_i32_1 = arith.constant 0 : i32
    return %arg0, %c0_i32, %c0_i32_0 : i32, i32, i32
  }
}

</mosaic_0001>

<llo_original>
// kernel: rnn_forward.1
$region0: #{rnn_forward.1}
  #allocation0 [shape = 'u32[]', space=smem, size = 0x4, offset = 0x4, fixed_abs, tag = 'smem constant byte address 0x4 - core index']
  #allocation1 [shape = 'u32[144,128]{1,0:T(1,128)}', space=vmem, size = 0x12000, scoped, tag = 'internal scratch']
  #allocation2 [shape = 'f32[64,256]{1,0:T(8,128)}', space=vmem, size = 0x10000, scoped, tag = 'scratch operand']
  #allocation3 [shape = 'f32[8,256]{1,0:T(8,128)}', space=vmem, size = 0x2000, scoped, tag = 'scratch operand']
  #allocation4 [shape = 'f32[8,256]{1,0:T(8,128)}', space=vmem, size = 0x2000, scoped, tag = 'scratch operand']
  #allocation5 [shape = 's32[1]{0}', space=sflag, size = 0x4, scoped, tag = 'scoped memory for rnn_forward.1']
  #allocation6 [shape = 's32[1]{0:T(128)S(6)}', space=smem, size = 0x200, scoped, tag = 'prefetched SMEM operand 0']
  %s0 = inlined_call_operand.<no memory space> [shape: s32[1], index: 0, kind: input, shape index: {}]
  %s1 = inlined_call_operand.vmem [shape: f32[1,64,128], index: 1, kind: input, shape index: {}]
  %s2 = inlined_call_operand.vmem [shape: bf16[128,256], index: 2, kind: input, shape index: {}]
  %s3 = inlined_call_operand.vmem [shape: bf16[256,256], index: 3, kind: input, shape index: {}]
  %s4 = inlined_call_operand.vmem [shape: f32[1,256], index: 4, kind: input, shape index: {}]
  %s5 = inlined_call_operand.vmem [shape: bf16[256,256], index: 5, kind: input, shape index: {}]
  %s6 = inlined_call_operand.vmem [shape: bf16[256,256], index: 6, kind: input, shape index: {}]
  %s7 = inlined_call_operand.vmem [shape: f32[1,256], index: 7, kind: input, shape index: {}]
  %s8 = inlined_call_operand.vmem [shape: f32[1,8,256], index: 8, kind: output, shape index: {}]
  %s9 = sld [smem:[#allocation0]]
  $region61: #{rnn_forward.1} parent=0
    _
  %s11 = ssub.s32 1, %s9
  %s12 = scalar_select 0, %s11, %s9
  %13 = sst [smem:[#allocation6]] %s0
  // Predicated region
  $region2: #{rnn_forward.1} parent=0 // pred_check
    _
  $region3: #{rnn_forward.1} parent=0 // pred_check_branch
    %15 = sbr.rel (0) target = $region5
  $region4: #{rnn_forward.1} parent=0 // pred_region
    _
  $region5: #{rnn_forward.1} parent=0 // pred_fallthru
    _
  // Predicated region
  $region6: #{rnn_forward.1} parent=0 // pred_check
    _
  $region7: #{rnn_forward.1} parent=0 // pred_check_branch
    %17 = sbr.rel (0) target = $region9
  $region8: #{rnn_forward.1} parent=0 // pred_region
    _
  $region9: #{rnn_forward.1} parent=0 // pred_fallthru
    _
  // Predicated region
  $region10: #{rnn_forward.1} parent=0 // pred_check
    _
  $region11: #{rnn_forward.1} parent=0 // pred_check_branch
    %19 = sbr.rel (0) target = $region13
  $region12: #{rnn_forward.1} parent=0 // pred_region
    _
  $region13: #{rnn_forward.1} parent=0 // pred_fallthru
    _
  // Predicated region
  $region14: #{rnn_forward.1} parent=0 // pred_check
    _
  $region15: #{rnn_forward.1} parent=0 // pred_check_branch
    %21 = sbr.rel (0) target = $region17
  $region16: #{rnn_forward.1} parent=0 // pred_region
    _
  $region17: #{rnn_forward.1} parent=0 // pred_fallthru
    _
  // Predicated region
  $region18: #{rnn_forward.1} parent=0 // pred_check
    _
  $region19: #{rnn_forward.1} parent=0 // pred_check_branch
    %23 = sbr.rel (0) target = $region21
  $region20: #{rnn_forward.1} parent=0 // pred_region
    _
  $region21: #{rnn_forward.1} parent=0 // pred_fallthru
    _
  // Predicated region
  $region22: #{rnn_forward.1} parent=0 // pred_check
    _
  $region23: #{rnn_forward.1} parent=0 // pred_check_branch
    %25 = sbr.rel (0) target = $region25
  $region24: #{rnn_forward.1} parent=0 // pred_region
    _
  $region25: #{rnn_forward.1} parent=0 // pred_fallthru
    _
  // Predicated region
  $region26: #{rnn_forward.1} parent=0 // pred_check
    _
  $region27: #{rnn_forward.1} parent=0 // pred_check_branch
    %27 = sbr.rel (0) target = $region29
  $region28: #{rnn_forward.1} parent=0 // pred_region
    _
  $region29: #{rnn_forward.1} parent=0 // pred_fallthru
    _
  %p29 = scmp.eq.s32.totalorder 0, 0
  // Predicated region
  $region30: #{rnn_forward.1} parent=0 // pred_check
    %p30 = pneg %p29
  $region31: #{rnn_forward.1} parent=0 // pred_check_branch
    %32 = sbr.rel (%p30) target = $region33
  $region32: #{rnn_forward.1} parent=0 // pred_region
    %33 = vst [vmem:[#allocation3] sm:$0xff] 0.0
    %34 = vst [vmem:[#allocation3 + $0x8] sm:$0xff] 0.0
    %35 = vst [vmem:[#allocation4] sm:$0xff] 0.0
    %36 = vst [vmem:[#allocation4 + $0x8] sm:$0xff] 0.0
  $region33: #{rnn_forward.1} parent=0 // pred_fallthru
    _
  %v37 = vld [vmem:[%s1] sm:$0xff]
  %v38 = vld [vmem:[%s1 + $0x8] sm:$0xff]
  %v39 = vld [vmem:[%s1 + $0x10] sm:$0xff]
  %v40 = vld [vmem:[%s1 + $0x18] sm:$0xff]
  %v41 = vld [vmem:[%s1 + $0x20] sm:$0xff]
  %v42 = vld [vmem:[%s1 + $0x28] sm:$0xff]
  %v43 = vld [vmem:[%s1 + $0x30] sm:$0xff]
  %v44 = vld [vmem:[%s1 + $0x38] sm:$0xff]
  %v45 = vpack.c.bf16 %v38, %v37
  %v46 = vpack.c.bf16 %v40, %v39
  %v47 = vpack.c.bf16 %v42, %v41
  %v48 = vpack.c.bf16 %v44, %v43
  %v49 = vld [vmem:[%s2] sm:$0xff]
  %v50 = vld [vmem:[%s2 + $0x8] sm:$0xff]
  %v51 = vld [vmem:[%s2 + $0x10] sm:$0xff]
  %v52 = vld [vmem:[%s2 + $0x18] sm:$0xff]
  %v53 = vld [vmem:[%s2 + $0x20] sm:$0xff]
  %v54 = vld [vmem:[%s2 + $0x28] sm:$0xff]
  %v55 = vld [vmem:[%s2 + $0x30] sm:$0xff]
  %v56 = vld [vmem:[%s2 + $0x38] sm:$0xff]
  %v57 = vld [vmem:[%s2 + $0x40] sm:$0xff]
  %v58 = vld [vmem:[%s2 + $0x48] sm:$0xff]
  %v59 = vld [vmem:[%s2 + $0x50] sm:$0xff]
  %v60 = vld [vmem:[%s2 + $0x58] sm:$0xff]
  %v61 = vld [vmem:[%s2 + $0x60] sm:$0xff]
  %v62 = vld [vmem:[%s2 + $0x68] sm:$0xff]
  %v63 = vld [vmem:[%s2 + $0x70] sm:$0xff]
  %v64 = vld [vmem:[%s2 + $0x78] sm:$0xff]
  %v65 = vld [vmem:[%s4] sm:$0x3]
  %v67 = vlaneseq
  %v68 = vshrl.u32 %v67, 7
  %v69 = vsub.s32 0, %v68
  %v70 = vrot.slane %v65, %v69
  %v71 = vlaneseq
  %v72 = vshrl.u32 %v71, 7
  %v73 = vsub.s32 1, %v72
  %v74 = vrot.slane %v65, %v73
  %v93 = vunpack.c.l.b16 %v49
  %v94 = vunpack.c.h.b16 %v49
  %v95 = vunpack.c.l.b16 %v50
  %v96 = vunpack.c.h.b16 %v50
  %v97 = vunpack.c.l.b16 %v51
  %v98 = vunpack.c.h.b16 %v51
  %v99 = vunpack.c.l.b16 %v52
  %v100 = vunpack.c.h.b16 %v52
  %v101 = vunpack.c.l.b16 %v53
  %v102 = vunpack.c.h.b16 %v53
  %v103 = vunpack.c.l.b16 %v54
  %v104 = vunpack.c.h.b16 %v54
  %v105 = vunpack.c.l.b16 %v55
  %v106 = vunpack.c.h.b16 %v55
  %v107 = vunpack.c.l.b16 %v56
  %v108 = vunpack.c.h.b16 %v56
  %v109 = vunpack.c.l.b16 %v57
  %v110 = vunpack.c.h.b16 %v57
  %v111 = vunpack.c.l.b16 %v58
  %v112 = vunpack.c.h.b16 %v58
  %v113 = vunpack.c.l.b16 %v59
  %v114 = vunpack.c.h.b16 %v59
  %v115 = vunpack.c.l.b16 %v60
  %v116 = vunpack.c.h.b16 %v60
  %v117 = vunpack.c.l.b16 %v61
  %v118 = vunpack.c.h.b16 %v61
  %v119 = vunpack.c.l.b16 %v62
  %v120 = vunpack.c.h.b16 %v62
  %v121 = vunpack.c.l.b16 %v63
  %v122 = vunpack.c.h.b16 %v63
  %v123 = vunpack.c.l.b16 %v64
  %v124 = vunpack.c.h.b16 %v64
  %v125 = vpack.c.b16 %v95, %v93
  %v126 = vpack.c.b16 %v96, %v94
  %v127 = vpack.c.b16 %v99, %v97
  %v128 = vpack.c.b16 %v100, %v98
  %v129 = vpack.c.b16 %v103, %v101
  %v130 = vpack.c.b16 %v104, %v102
  %v131 = vpack.c.b16 %v107, %v105
  %v132 = vpack.c.b16 %v108, %v106
  %v133 = vpack.c.b16 %v111, %v109
  %v134 = vpack.c.b16 %v112, %v110
  %v135 = vpack.c.b16 %v115, %v113
  %v136 = vpack.c.b16 %v116, %v114
  %v137 = vpack.c.b16 %v119, %v117
  %v138 = vpack.c.b16 %v120, %v118
  %v139 = vpack.c.b16 %v123, %v121
  %v140 = vpack.c.b16 %v124, %v122
  %157 = vmatprep.subr.bf16.mxu0 %v140
  %158 = vmatpush1.bf16.msra.mxu0 %v139
  %159 = vmatprep.subr.bf16.mxu0 %v138
  %160 = vmatpush1.bf16.msra.mxu0 %v137
  %161 = vmatprep.subr.bf16.mxu0 %v136
  %162 = vmatpush1.bf16.msra.mxu0 %v135
  %163 = vmatprep.subr.bf16.mxu0 %v134
  %164 = vmatpush1.bf16.msra.mxu0 %v133
  %165 = vmatprep.subr.bf16.mxu0 %v132
  %166 = vmatpush1.bf16.msra.mxu0 %v131
  %167 = vmatprep.subr.bf16.mxu0 %v130
  %168 = vmatpush1.bf16.msra.mxu0 %v129
  %169 = vmatprep.subr.bf16.mxu0 %v128
  %170 = vmatpush1.bf16.msra.mxu0 %v127
  %171 = vmatprep.subr.bf16.mxu0 %v126
  %172 = vmatpush1.bf16.msra.mxu0 %v125
  %173 = vmatprep.subr.bf16.mxu0 0
  %174 = vmatpush2.bf16.msra.mxu0 0
  %175 = vmatprep.subr.bf16.mxu0 0
  %176 = vmatpush2.bf16.msra.mxu0 0
  %177 = vmatprep.subr.bf16.mxu0 0
  %178 = vmatpush2.bf16.msra.mxu0 0
  %179 = vmatprep.subr.bf16.mxu0 0
  %180 = vmatpush2.bf16.msra.mxu0 0
  %181 = vmatprep.subr.bf16.mxu0 0
  %182 = vmatpush2.bf16.msra.mxu0 0
  %183 = vmatprep.subr.bf16.mxu0 0
  %184 = vmatpush2.bf16.msra.mxu0 0
  %185 = vmatprep.subr.bf16.mxu0 0
  %186 = vmatpush2.bf16.msra.mxu0 0
  %187 = vmatprep.subr.bf16.mxu0 0
  %188 = vmatpush2.bf16.msra.mxu0 0
  %189 = vmatprep.mubr.bf16.mxu0 0
  %190 = vmatmul.mubr.bf16.gmra.mxu0 %v45
  %v191 = vpop.f32.mrf.mxu0
  %v192 = vadd.f32 %v70, %v191
  %v193 = vpop.f32.mrf.mxu0
  %v194 = vadd.f32 %v74, %v193
  %v195 = vpop.f32.mrf.mxu0
  %v196 = vadd.f32 %v70, %v195
  %v197 = vpop.f32.mrf.mxu0
  %v198 = vadd.f32 %v74, %v197
  %199 = vmatprep.mubr.bf16.mxu0 0
  %200 = vmatmul.mubr.bf16.gmra.mxu0 %v46
  %v201 = vpop.f32.mrf.mxu0
  %v202 = vadd.f32 %v70, %v201
  %v203 = vpop.f32.mrf.mxu0
  %v204 = vadd.f32 %v74, %v203
  %v205 = vpop.f32.mrf.mxu0
  %v206 = vadd.f32 %v70, %v205
  %v207 = vpop.f32.mrf.mxu0
  %v208 = vadd.f32 %v74, %v207
  %209 = vmatprep.mubr.bf16.mxu0 0
  %210 = vmatmul.mubr.bf16.gmra.mxu0 %v47
  %v211 = vpop.f32.mrf.mxu0
  %v212 = vadd.f32 %v70, %v211
  %v213 = vpop.f32.mrf.mxu0
  %v214 = vadd.f32 %v74, %v213
  %v215 = vpop.f32.mrf.mxu0
  %v216 = vadd.f32 %v70, %v215
  %v217 = vpop.f32.mrf.mxu0
  %v218 = vadd.f32 %v74, %v217
  %219 = vmatprep.mubr.bf16.mxu0 0
  %220 = vmatmul.mubr.bf16.gmra.mxu0 %v48
  %v221 = vpop.f32.mrf.mxu0
  %v222 = vadd.f32 %v70, %v221
  %v223 = vpop.f32.mrf.mxu0
  %v224 = vadd.f32 %v74, %v223
  %v225 = vpop.f32.mrf.mxu0
  %v226 = vadd.f32 %v70, %v225
  %v227 = vpop.f32.mrf.mxu0
  %v228 = vadd.f32 %v74, %v227
  %229 = vdwg.mxu0
  %230 = vst [vmem:[#allocation2] sm:$0xff] %v192
  %231 = vst [vmem:[#allocation2 + $0x8] sm:$0xff] %v194
  %232 = vst [vmem:[#allocation2 + $0x10] sm:$0xff] %v196
  %233 = vst [vmem:[#allocation2 + $0x18] sm:$0xff] %v198
  %234 = vst [vmem:[#allocation2 + $0x20] sm:$0xff] %v202
  %235 = vst [vmem:[#allocation2 + $0x28] sm:$0xff] %v204
  %236 = vst [vmem:[#allocation2 + $0x30] sm:$0xff] %v206
  %237 = vst [vmem:[#allocation2 + $0x38] sm:$0xff] %v208
  %238 = vst [vmem:[#allocation2 + $0x40] sm:$0xff] %v212
  %239 = vst [vmem:[#allocation2 + $0x48] sm:$0xff] %v214
  %240 = vst [vmem:[#allocation2 + $0x50] sm:$0xff] %v216
  %241 = vst [vmem:[#allocation2 + $0x58] sm:$0xff] %v218
  %242 = vst [vmem:[#allocation2 + $0x60] sm:$0xff] %v222
  %243 = vst [vmem:[#allocation2 + $0x68] sm:$0xff] %v224
  %244 = vst [vmem:[#allocation2 + $0x70] sm:$0xff] %v226
  %245 = vst [vmem:[#allocation2 + $0x78] sm:$0xff] %v228
  %v246 = vld [vmem:[%s3] sm:$0xff]
  %v247 = vld [vmem:[%s3 + $0x8] sm:$0xff]
  %v248 = vld [vmem:[%s3 + $0x10] sm:$0xff]
  %v249 = vld [vmem:[%s3 + $0x18] sm:$0xff]
  %v250 = vld [vmem:[%s3 + $0x20] sm:$0xff]
  %v251 = vld [vmem:[%s3 + $0x28] sm:$0xff]
  %v252 = vld [vmem:[%s3 + $0x30] sm:$0xff]
  %v253 = vld [vmem:[%s3 + $0x38] sm:$0xff]
  %v254 = vld [vmem:[%s3 + $0x40] sm:$0xff]
  %v255 = vld [vmem:[%s3 + $0x48] sm:$0xff]
  %v256 = vld [vmem:[%s3 + $0x50] sm:$0xff]
  %v257 = vld [vmem:[%s3 + $0x58] sm:$0xff]
  %v258 = vld [vmem:[%s3 + $0x60] sm:$0xff]
  %v259 = vld [vmem:[%s3 + $0x68] sm:$0xff]
  %v260 = vld [vmem:[%s3 + $0x70] sm:$0xff]
  %v261 = vld [vmem:[%s3 + $0x78] sm:$0xff]
  %v262 = vld [vmem:[%s3 + $0x80] sm:$0xff]
  %v263 = vld [vmem:[%s3 + $0x88] sm:$0xff]
  %v264 = vld [vmem:[%s3 + $0x90] sm:$0xff]
  %v265 = vld [vmem:[%s3 + $0x98] sm:$0xff]
  %v266 = vld [vmem:[%s3 + $0xa0] sm:$0xff]
  %v267 = vld [vmem:[%s3 + $0xa8] sm:$0xff]
  %v268 = vld [vmem:[%s3 + $0xb0] sm:$0xff]
  %v269 = vld [vmem:[%s3 + $0xb8] sm:$0xff]
  %v270 = vld [vmem:[%s3 + $0xc0] sm:$0xff]
  %v271 = vld [vmem:[%s3 + $0xc8] sm:$0xff]
  %v272 = vld [vmem:[%s3 + $0xd0] sm:$0xff]
  %v273 = vld [vmem:[%s3 + $0xd8] sm:$0xff]
  %v274 = vld [vmem:[%s3 + $0xe0] sm:$0xff]
  %v275 = vld [vmem:[%s3 + $0xe8] sm:$0xff]
  %v276 = vld [vmem:[%s3 + $0xf0] sm:$0xff]
  %v277 = vld [vmem:[%s3 + $0xf8] sm:$0xff]
  %v278 = vld [vmem:[%s5] sm:$0xff]
  %v279 = vld [vmem:[%s5 + $0x8] sm:$0xff]
  %v280 = vld [vmem:[%s5 + $0x10] sm:$0xff]
  %v281 = vld [vmem:[%s5 + $0x18] sm:$0xff]
  %v282 = vld [vmem:[%s5 + $0x20] sm:$0xff]
  %v283 = vld [vmem:[%s5 + $0x28] sm:$0xff]
  %v284 = vld [vmem:[%s5 + $0x30] sm:$0xff]
  %v285 = vld [vmem:[%s5 + $0x38] sm:$0xff]
  %v286 = vld [vmem:[%s5 + $0x40] sm:$0xff]
  %v287 = vld [vmem:[%s5 + $0x48] sm:$0xff]
  %v288 = vld [vmem:[%s5 + $0x50] sm:$0xff]
  %v289 = vld [vmem:[%s5 + $0x58] sm:$0xff]
  %v290 = vld [vmem:[%s5 + $0x60] sm:$0xff]
  %v291 = vld [vmem:[%s5 + $0x68] sm:$0xff]
  %v292 = vld [vmem:[%s5 + $0x70] sm:$0xff]
  %v293 = vld [vmem:[%s5 + $0x78] sm:$0xff]
  %v294 = vld [vmem:[%s5 + $0x80] sm:$0xff]
  %v295 = vld [vmem:[%s5 + $0x88] sm:$0xff]
  %v296 = vld [vmem:[%s5 + $0x90] sm:$0xff]
  %v297 = vld [vmem:[%s5 + $0x98] sm:$0xff]
  %v298 = vld [vmem:[%s5 + $0xa0] sm:$0xff]
  %v299 = vld [vmem:[%s5 + $0xa8] sm:$0xff]
  %v300 = vld [vmem:[%s5 + $0xb0] sm:$0xff]
  %v301 = vld [vmem:[%s5 + $0xb8] sm:$0xff]
  %v302 = vld [vmem:[%s5 + $0xc0] sm:$0xff]
  %v303 = vld [vmem:[%s5 + $0xc8] sm:$0xff]
  %v304 = vld [vmem:[%s5 + $0xd0] sm:$0xff]
  %v305 = vld [vmem:[%s5 + $0xd8] sm:$0xff]
  %v306 = vld [vmem:[%s5 + $0xe0] sm:$0xff]
  %v307 = vld [vmem:[%s5 + $0xe8] sm:$0xff]
  %v308 = vld [vmem:[%s5 + $0xf0] sm:$0xff]
  %v309 = vld [vmem:[%s5 + $0xf8] sm:$0xff]
  %v310 = vld [vmem:[%s6] sm:$0xff]
  %v311 = vld [vmem:[%s6 + $0x8] sm:$0xff]
  %v312 = vld [vmem:[%s6 + $0x10] sm:$0xff]
  %v313 = vld [vmem:[%s6 + $0x18] sm:$0xff]
  %v314 = vld [vmem:[%s6 + $0x20] sm:$0xff]
  %v315 = vld [vmem:[%s6 + $0x28] sm:$0xff]
  %v316 = vld [vmem:[%s6 + $0x30] sm:$0xff]
  %v317 = vld [vmem:[%s6 + $0x38] sm:$0xff]
  %v318 = vld [vmem:[%s6 + $0x40] sm:$0xff]
  %v319 = vld [vmem:[%s6 + $0x48] sm:$0xff]
  %v320 = vld [vmem:[%s6 + $0x50] sm:$0xff]
  %v321 = vld [vmem:[%s6 + $0x58] sm:$0xff]
  %v322 = vld [vmem:[%s6 + $0x60] sm:$0xff]
  %v323 = vld [vmem:[%s6 + $0x68] sm:$0xff]
  %v324 = vld [vmem:[%s6 + $0x70] sm:$0xff]
  %v325 = vld [vmem:[%s6 + $0x78] sm:$0xff]
  %v326 = vld [vmem:[%s6 + $0x80] sm:$0xff]
  %v327 = vld [vmem:[%s6 + $0x88] sm:$0xff]
  %v328 = vld [vmem:[%s6 + $0x90] sm:$0xff]
  %v329 = vld [vmem:[%s6 + $0x98] sm:$0xff]
  %v330 = vld [vmem:[%s6 + $0xa0] sm:$0xff]
  %v331 = vld [vmem:[%s6 + $0xa8] sm:$0xff]
  %v332 = vld [vmem:[%s6 + $0xb0] sm:$0xff]
  %v333 = vld [vmem:[%s6 + $0xb8] sm:$0xff]
  %v334 = vld [vmem:[%s6 + $0xc0] sm:$0xff]
  %v335 = vld [vmem:[%s6 + $0xc8] sm:$0xff]
  %v336 = vld [vmem:[%s6 + $0xd0] sm:$0xff]
  %v337 = vld [vmem:[%s6 + $0xd8] sm:$0xff]
  %v338 = vld [vmem:[%s6 + $0xe0] sm:$0xff]
  %v339 = vld [vmem:[%s6 + $0xe8] sm:$0xff]
  %v340 = vld [vmem:[%s6 + $0xf0] sm:$0xff]
  %v341 = vld [vmem:[%s6 + $0xf8] sm:$0xff]
  %v342 = vld [vmem:[%s7] sm:$0x3]
  %v344 = vlaneseq
  %v345 = vshrl.u32 %v344, 7
  %v346 = vsub.s32 0, %v345
  %v347 = vrot.slane %v342, %v346
  %v348 = vlaneseq
  %v349 = vshrl.u32 %v348, 7
  %v350 = vsub.s32 1, %v349
  %v351 = vrot.slane %v342, %v350
  %s354 = sld [smem:[#allocation6]]
  %s355 = smul.u32 0, 8
  %s356 = sadd.s32 %s355, 8
  %p357 = scmp.le.s32.totalorder %s356, %s354
  // Predicated region
  $region34: #{rnn_forward.1} parent=0 // pred_check
    %p358 = pneg %p357
  $region35: #{rnn_forward.1} parent=0 // pred_check_branch
    %360 = sbr.rel (%p358) target = $region37
  $region36: #{rnn_forward.1} parent=0 // pred_region
    %v361 = vld [vmem:[#allocation3] sm:$0xff]
    %v362 = vld [vmem:[#allocation3 + $0x8] sm:$0xff]
    %v363 = vld [vmem:[#allocation4] sm:$0xff]
    %v364 = vld [vmem:[#allocation4 + $0x8] sm:$0xff]
    %s365 = smul.u32 0, 2
    %s366 = smul.addr %s365, 8
    %s367 = scalar_lea.vmem [#allocation2], %s366
    %v368 = vld [vmem:[%s367] sm:$0xff]
    %v369 = vld [vmem:[%s367 + $0x8] sm:$0xff]
    %v370 = vpack.c.bf16 %v361, %v361
    %v371 = vpack.c.bf16 %v362, %v362
    %v404 = vunpack.c.l.b16 %v246
    %v405 = vunpack.c.h.b16 %v246
    %v406 = vunpack.c.l.b16 %v247
    %v407 = vunpack.c.h.b16 %v247
    %v408 = vunpack.c.l.b16 %v248
    %v409 = vunpack.c.h.b16 %v248
    %v410 = vunpack.c.l.b16 %v249
    %v411 = vunpack.c.h.b16 %v249
    %v412 = vunpack.c.l.b16 %v250
    %v413 = vunpack.c.h.b16 %v250
    %v414 = vunpack.c.l.b16 %v251
    %v415 = vunpack.c.h.b16 %v251
    %v416 = vunpack.c.l.b16 %v252
    %v417 = vunpack.c.h.b16 %v252
    %v418 = vunpack.c.l.b16 %v253
    %v419 = vunpack.c.h.b16 %v253
    %v420 = vunpack.c.l.b16 %v254
    %v421 = vunpack.c.h.b16 %v254
    %v422 = vunpack.c.l.b16 %v255
    %v423 = vunpack.c.h.b16 %v255
    %v424 = vunpack.c.l.b16 %v256
    %v425 = vunpack.c.h.b16 %v256
    %v426 = vunpack.c.l.b16 %v257
    %v427 = vunpack.c.h.b16 %v257
    %v428 = vunpack.c.l.b16 %v258
    %v429 = vunpack.c.h.b16 %v258
    %v430 = vunpack.c.l.b16 %v259
    %v431 = vunpack.c.h.b16 %v259
    %v432 = vunpack.c.l.b16 %v260
    %v433 = vunpack.c.h.b16 %v260
    %v434 = vunpack.c.l.b16 %v261
    %v435 = vunpack.c.h.b16 %v261
    %v436 = vunpack.c.l.b16 %v262
    %v437 = vunpack.c.h.b16 %v262
    %v438 = vunpack.c.l.b16 %v263
    %v439 = vunpack.c.h.b16 %v263
    %v440 = vunpack.c.l.b16 %v264
    %v441 = vunpack.c.h.b16 %v264
    %v442 = vunpack.c.l.b16 %v265
    %v443 = vunpack.c.h.b16 %v265
    %v444 = vunpack.c.l.b16 %v266
    %v445 = vunpack.c.h.b16 %v266
    %v446 = vunpack.c.l.b16 %v267
    %v447 = vunpack.c.h.b16 %v267
    %v448 = vunpack.c.l.b16 %v268
    %v449 = vunpack.c.h.b16 %v268
    %v450 = vunpack.c.l.b16 %v269
    %v451 = vunpack.c.h.b16 %v269
    %v452 = vunpack.c.l.b16 %v270
    %v453 = vunpack.c.h.b16 %v270
    %v454 = vunpack.c.l.b16 %v271
    %v455 = vunpack.c.h.b16 %v271
    %v456 = vunpack.c.l.b16 %v272
    %v457 = vunpack.c.h.b16 %v272
    %v458 = vunpack.c.l.b16 %v273
    %v459 = vunpack.c.h.b16 %v273
    %v460 = vunpack.c.l.b16 %v274
    %v461 = vunpack.c.h.b16 %v274
    %v462 = vunpack.c.l.b16 %v275
    %v463 = vunpack.c.h.b16 %v275
    %v464 = vunpack.c.l.b16 %v276
    %v465 = vunpack.c.h.b16 %v276
    %v466 = vunpack.c.l.b16 %v277
    %v467 = vunpack.c.h.b16 %v277
    %v468 = vpack.c.b16 %v406, %v404
    %v469 = vpack.c.b16 %v407, %v405
    %v470 = vpack.c.b16 %v410, %v408
    %v471 = vpack.c.b16 %v411, %v409
    %v472 = vpack.c.b16 %v414, %v412
    %v473 = vpack.c.b16 %v415, %v413
    %v474 = vpack.c.b16 %v418, %v416
    %v475 = vpack.c.b16 %v419, %v417
    %v476 = vpack.c.b16 %v422, %v420
    %v477 = vpack.c.b16 %v423, %v421
    %v478 = vpack.c.b16 %v426, %v424
    %v479 = vpack.c.b16 %v427, %v425
    %v480 = vpack.c.b16 %v430, %v428
    %v481 = vpack.c.b16 %v431, %v429
    %v482 = vpack.c.b16 %v434, %v432
    %v483 = vpack.c.b16 %v435, %v433
    %v484 = vpack.c.b16 %v438, %v436
    %v485 = vpack.c.b16 %v439, %v437
    %v486 = vpack.c.b16 %v442, %v440
    %v487 = vpack.c.b16 %v443, %v441
    %v488 = vpack.c.b16 %v446, %v444
    %v489 = vpack.c.b16 %v447, %v445
    %v490 = vpack.c.b16 %v450, %v448
    %v491 = vpack.c.b16 %v451, %v449
    %v492 = vpack.c.b16 %v454, %v452
    %v493 = vpack.c.b16 %v455, %v453
    %v494 = vpack.c.b16 %v458, %v456
    %v495 = vpack.c.b16 %v459, %v457
    %v496 = vpack.c.b16 %v462, %v460
    %v497 = vpack.c.b16 %v463, %v461
    %v498 = vpack.c.b16 %v466, %v464
    %v499 = vpack.c.b16 %v467, %v465
    %532 = vmatprep.subr.bf16.mxu0 %v483
    %533 = vmatpush1.bf16.msra.mxu0 %v482
    %534 = vmatprep.subr.bf16.mxu0 %v481
    %535 = vmatpush1.bf16.msra.mxu0 %v480
    %536 = vmatprep.subr.bf16.mxu0 %v479
    %537 = vmatpush1.bf16.msra.mxu0 %v478
    %538 = vmatprep.subr.bf16.mxu0 %v477
    %539 = vmatpush1.bf16.msra.mxu0 %v476
    %540 = vmatprep.subr.bf16.mxu0 %v475
    %541 = vmatpush1.bf16.msra.mxu0 %v474
    %542 = vmatprep.subr.bf16.mxu0 %v473
    %543 = vmatpush1.bf16.msra.mxu0 %v472
    %544 = vmatprep.subr.bf16.mxu0 %v471
    %545 = vmatpush1.bf16.msra.mxu0 %v470
    %546 = vmatprep.subr.bf16.mxu0 %v469
    %547 = vmatpush1.bf16.msra.mxu0 %v468
    %548 = vmatprep.subr.bf16.mxu0 %v499
    %549 = vmatpush2.bf16.msra.mxu0 %v498
    %550 = vmatprep.subr.bf16.mxu0 %v497
    %551 = vmatpush2.bf16.msra.mxu0 %v496
    %552 = vmatprep.subr.bf16.mxu0 %v495
    %553 = vmatpush2.bf16.msra.mxu0 %v494
    %554 = vmatprep.subr.bf16.mxu0 %v493
    %555 = vmatpush2.bf16.msra.mxu0 %v492
    %556 = vmatprep.subr.bf16.mxu0 %v491
    %557 = vmatpush2.bf16.msra.mxu0 %v490
    %558 = vmatprep.subr.bf16.mxu0 %v489
    %559 = vmatpush2.bf16.msra.mxu0 %v488
    %560 = vmatprep.subr.bf16.mxu0 %v487
    %561 = vmatpush2.bf16.msra.mxu0 %v486
    %562 = vmatprep.subr.bf16.mxu0 %v485
    %563 = vmatpush2.bf16.msra.mxu0 %v484
    %564 = vmatprep.mubr.bf16.mxu0 %v371
    %565 = vmatmul.mubr.bf16.gmra.mxu0 %v370
    %v566 = vpop.f32.mrf.mxu0
    %v567 = vadd.f32 0.0, %v566
    %v568 = vpop.f32.mrf.mxu0
    %v569 = vadd.f32 0.0, %v568
    %v570 = vpop.f32.mrf.mxu0
    %v571 = vpop.f32.mrf.mxu0
    %572 = vdwg.mxu0
    %v573 = vadd.f32 %v368, %v567
    %v574 = vadd.f32 %v369, %v569
    %v575 = vtanh.pop %v573
    %v576 = vtanh.pop %v574
    %v577 = vpack.c.bf16 %v575, %v575
    %v578 = vpack.c.bf16 %v576, %v576
    %v579 = vpack.c.bf16 %v363, %v363
    %v580 = vpack.c.bf16 %v364, %v364
    %v613 = vunpack.c.l.b16 %v310
    %v614 = vunpack.c.h.b16 %v310
    %v615 = vunpack.c.l.b16 %v311
    %v616 = vunpack.c.h.b16 %v311
    %v617 = vunpack.c.l.b16 %v312
    %v618 = vunpack.c.h.b16 %v312
    %v619 = vunpack.c.l.b16 %v313
    %v620 = vunpack.c.h.b16 %v313
    %v621 = vunpack.c.l.b16 %v314
    %v622 = vunpack.c.h.b16 %v314
    %v623 = vunpack.c.l.b16 %v315
    %v624 = vunpack.c.h.b16 %v315
    %v625 = vunpack.c.l.b16 %v316
    %v626 = vunpack.c.h.b16 %v316
    %v627 = vunpack.c.l.b16 %v317
    %v628 = vunpack.c.h.b16 %v317
    %v629 = vunpack.c.l.b16 %v318
    %v630 = vunpack.c.h.b16 %v318
    %v631 = vunpack.c.l.b16 %v319
    %v632 = vunpack.c.h.b16 %v319
    %v633 = vunpack.c.l.b16 %v320
    %v634 = vunpack.c.h.b16 %v320
    %v635 = vunpack.c.l.b16 %v321
    %v636 = vunpack.c.h.b16 %v321
    %v637 = vunpack.c.l.b16 %v322
    %v638 = vunpack.c.h.b16 %v322
    %v639 = vunpack.c.l.b16 %v323
    %v640 = vunpack.c.h.b16 %v323
    %v641 = vunpack.c.l.b16 %v324
    %v642 = vunpack.c.h.b16 %v324
    %v643 = vunpack.c.l.b16 %v325
    %v644 = vunpack.c.h.b16 %v325
    %v645 = vunpack.c.l.b16 %v326
    %v646 = vunpack.c.h.b16 %v326
    %v647 = vunpack.c.l.b16 %v327
    %v648 = vunpack.c.h.b16 %v327
    %v649 = vunpack.c.l.b16 %v328
    %v650 = vunpack.c.h.b16 %v328
    %v651 = vunpack.c.l.b16 %v329
    %v652 = vunpack.c.h.b16 %v329
    %v653 = vunpack.c.l.b16 %v330
    %v654 = vunpack.c.h.b16 %v330
    %v655 = vunpack.c.l.b16 %v331
    %v656 = vunpack.c.h.b16 %v331
    %v657 = vunpack.c.l.b16 %v332
    %v658 = vunpack.c.h.b16 %v332
    %v659 = vunpack.c.l.b16 %v333
    %v660 = vunpack.c.h.b16 %v333
    %v661 = vunpack.c.l.b16 %v334
    %v662 = vunpack.c.h.b16 %v334
    %v663 = vunpack.c.l.b16 %v335
    %v664 = vunpack.c.h.b16 %v335
    %v665 = vunpack.c.l.b16 %v336
    %v666 = vunpack.c.h.b16 %v336
    %v667 = vunpack.c.l.b16 %v337
    %v668 = vunpack.c.h.b16 %v337
    %v669 = vunpack.c.l.b16 %v338
    %v670 = vunpack.c.h.b16 %v338
    %v671 = vunpack.c.l.b16 %v339
    %v672 = vunpack.c.h.b16 %v339
    %v673 = vunpack.c.l.b16 %v340
    %v674 = vunpack.c.h.b16 %v340
    %v675 = vunpack.c.l.b16 %v341
    %v676 = vunpack.c.h.b16 %v341
    %v677 = vpack.c.b16 %v615, %v613
    %v678 = vpack.c.b16 %v616, %v614
    %v679 = vpack.c.b16 %v619, %v617
    %v680 = vpack.c.b16 %v620, %v618
    %v681 = vpack.c.b16 %v623, %v621
    %v682 = vpack.c.b16 %v624, %v622
    %v683 = vpack.c.b16 %v627, %v625
    %v684 = vpack.c.b16 %v628, %v626
    %v685 = vpack.c.b16 %v631, %v629
    %v686 = vpack.c.b16 %v632, %v630
    %v687 = vpack.c.b16 %v635, %v633
    %v688 = vpack.c.b16 %v636, %v634
    %v689 = vpack.c.b16 %v639, %v637
    %v690 = vpack.c.b16 %v640, %v638
    %v691 = vpack.c.b16 %v643, %v641
    %v692 = vpack.c.b16 %v644, %v642
    %v693 = vpack.c.b16 %v647, %v645
    %v694 = vpack.c.b16 %v648, %v646
    %v695 = vpack.c.b16 %v651, %v649
    %v696 = vpack.c.b16 %v652, %v650
    %v697 = vpack.c.b16 %v655, %v653
    %v698 = vpack.c.b16 %v656, %v654
    %v699 = vpack.c.b16 %v659, %v657
    %v700 = vpack.c.b16 %v660, %v658
    %v701 = vpack.c.b16 %v663, %v661
    %v702 = vpack.c.b16 %v664, %v662
    %v703 = vpack.c.b16 %v667, %v665
    %v704 = vpack.c.b16 %v668, %v666
    %v705 = vpack.c.b16 %v671, %v669
    %v706 = vpack.c.b16 %v672, %v670
    %v707 = vpack.c.b16 %v675, %v673
    %v708 = vpack.c.b16 %v676, %v674
    %741 = vmatprep.subr.bf16.mxu0 %v692
    %742 = vmatpush1.bf16.msra.mxu0 %v691
    %743 = vmatprep.subr.bf16.mxu0 %v690
    %744 = vmatpush1.bf16.msra.mxu0 %v689
    %745 = vmatprep.subr.bf16.mxu0 %v688
    %746 = vmatpush1.bf16.msra.mxu0 %v687
    %747 = vmatprep.subr.bf16.mxu0 %v686
    %748 = vmatpush1.bf16.msra.mxu0 %v685
    %749 = vmatprep.subr.bf16.mxu0 %v684
    %750 = vmatpush1.bf16.msra.mxu0 %v683
    %751 = vmatprep.subr.bf16.mxu0 %v682
    %752 = vmatpush1.bf16.msra.mxu0 %v681
    %753 = vmatprep.subr.bf16.mxu0 %v680
    %754 = vmatpush1.bf16.msra.mxu0 %v679
    %755 = vmatprep.subr.bf16.mxu0 %v678
    %756 = vmatpush1.bf16.msra.mxu0 %v677
    %757 = vmatprep.subr.bf16.mxu0 %v708
    %758 = vmatpush2.bf16.msra.mxu0 %v707
    %759 = vmatprep.subr.bf16.mxu0 %v706
    %760 = vmatpush2.bf16.msra.mxu0 %v705
    %761 = vmatprep.subr.bf16.mxu0 %v704
    %762 = vmatpush2.bf16.msra.mxu0 %v703
    %763 = vmatprep.subr.bf16.mxu0 %v702
    %764 = vmatpush2.bf16.msra.mxu0 %v701
    %765 = vmatprep.subr.bf16.mxu0 %v700
    %766 = vmatpush2.bf16.msra.mxu0 %v699
    %767 = vmatprep.subr.bf16.mxu0 %v698
    %768 = vmatpush2.bf16.msra.mxu0 %v697
    %769 = vmatprep.subr.bf16.mxu0 %v696
    %770 = vmatpush2.bf16.msra.mxu0 %v695
    %771 = vmatprep.subr.bf16.mxu0 %v694
    %772 = vmatpush2.bf16.msra.mxu0 %v693
    %773 = vmatprep.mubr.bf16.mxu0 %v580
    %774 = vmatmul.mubr.bf16.gmra.mxu0 %v579
    %v775 = vpop.f32.mrf.mxu0
    %v776 = vadd.f32 0.0, %v775
    %v777 = vpop.f32.mrf.mxu0
    %v778 = vadd.f32 0.0, %v777
    %v779 = vpop.f32.mrf.mxu0
    %v780 = vpop.f32.mrf.mxu0
    %781 = vdwg.mxu0
    %v814 = vunpack.c.l.b16 %v278
    %v815 = vunpack.c.h.b16 %v278
    %v816 = vunpack.c.l.b16 %v279
    %v817 = vunpack.c.h.b16 %v279
    %v818 = vunpack.c.l.b16 %v280
    %v819 = vunpack.c.h.b16 %v280
    %v820 = vunpack.c.l.b16 %v281
    %v821 = vunpack.c.h.b16 %v281
    %v822 = vunpack.c.l.b16 %v282
    %v823 = vunpack.c.h.b16 %v282
    %v824 = vunpack.c.l.b16 %v283
    %v825 = vunpack.c.h.b16 %v283
    %v826 = vunpack.c.l.b16 %v284
    %v827 = vunpack.c.h.b16 %v284
    %v828 = vunpack.c.l.b16 %v285
    %v829 = vunpack.c.h.b16 %v285
    %v830 = vunpack.c.l.b16 %v286
    %v831 = vunpack.c.h.b16 %v286
    %v832 = vunpack.c.l.b16 %v287
    %v833 = vunpack.c.h.b16 %v287
    %v834 = vunpack.c.l.b16 %v288
    %v835 = vunpack.c.h.b16 %v288
    %v836 = vunpack.c.l.b16 %v289
    %v837 = vunpack.c.h.b16 %v289
    %v838 = vunpack.c.l.b16 %v290
    %v839 = vunpack.c.h.b16 %v290
    %v840 = vunpack.c.l.b16 %v291
    %v841 = vunpack.c.h.b16 %v291
    %v842 = vunpack.c.l.b16 %v292
    %v843 = vunpack.c.h.b16 %v292
    %v844 = vunpack.c.l.b16 %v293
    %v845 = vunpack.c.h.b16 %v293
    %v846 = vunpack.c.l.b16 %v294
    %v847 = vunpack.c.h.b16 %v294
    %v848 = vunpack.c.l.b16 %v295
    %v849 = vunpack.c.h.b16 %v295
    %v850 = vunpack.c.l.b16 %v296
    %v851 = vunpack.c.h.b16 %v296
    %v852 = vunpack.c.l.b16 %v297
    %v853 = vunpack.c.h.b16 %v297
    %v854 = vunpack.c.l.b16 %v298
    %v855 = vunpack.c.h.b16 %v298
    %v856 = vunpack.c.l.b16 %v299
    %v857 = vunpack.c.h.b16 %v299
    %v858 = vunpack.c.l.b16 %v300
    %v859 = vunpack.c.h.b16 %v300
    %v860 = vunpack.c.l.b16 %v301
    %v861 = vunpack.c.h.b16 %v301
    %v862 = vunpack.c.l.b16 %v302
    %v863 = vunpack.c.h.b16 %v302
    %v864 = vunpack.c.l.b16 %v303
    %v865 = vunpack.c.h.b16 %v303
    %v866 = vunpack.c.l.b16 %v304
    %v867 = vunpack.c.h.b16 %v304
    %v868 = vunpack.c.l.b16 %v305
    %v869 = vunpack.c.h.b16 %v305
    %v870 = vunpack.c.l.b16 %v306
    %v871 = vunpack.c.h.b16 %v306
    %v872 = vunpack.c.l.b16 %v307
    %v873 = vunpack.c.h.b16 %v307
    %v874 = vunpack.c.l.b16 %v308
    %v875 = vunpack.c.h.b16 %v308
    %v876 = vunpack.c.l.b16 %v309
    %v877 = vunpack.c.h.b16 %v309
    %v878 = vpack.c.b16 %v816, %v814
    %v879 = vpack.c.b16 %v817, %v815
    %v880 = vpack.c.b16 %v820, %v818
    %v881 = vpack.c.b16 %v821, %v819
    %v882 = vpack.c.b16 %v824, %v822
    %v883 = vpack.c.b16 %v825, %v823
    %v884 = vpack.c.b16 %v828, %v826
    %v885 = vpack.c.b16 %v829, %v827
    %v886 = vpack.c.b16 %v832, %v830
    %v887 = vpack.c.b16 %v833, %v831
    %v888 = vpack.c.b16 %v836, %v834
    %v889 = vpack.c.b16 %v837, %v835
    %v890 = vpack.c.b16 %v840, %v838
    %v891 = vpack.c.b16 %v841, %v839
    %v892 = vpack.c.b16 %v844, %v842
    %v893 = vpack.c.b16 %v845, %v843
    %v894 = vpack.c.b16 %v848, %v846
    %v895 = vpack.c.b16 %v849, %v847
    %v896 = vpack.c.b16 %v852, %v850
    %v897 = vpack.c.b16 %v853, %v851
    %v898 = vpack.c.b16 %v856, %v854
    %v899 = vpack.c.b16 %v857, %v855
    %v900 = vpack.c.b16 %v860, %v858
    %v901 = vpack.c.b16 %v861, %v859
    %v902 = vpack.c.b16 %v864, %v862
    %v903 = vpack.c.b16 %v865, %v863
    %v904 = vpack.c.b16 %v868, %v866
    %v905 = vpack.c.b16 %v869, %v867
    %v906 = vpack.c.b16 %v872, %v870
    %v907 = vpack.c.b16 %v873, %v871
    %v908 = vpack.c.b16 %v876, %v874
    %v909 = vpack.c.b16 %v877, %v875
    %942 = vmatprep.subr.bf16.mxu0 %v893
    %943 = vmatpush1.bf16.msra.mxu0 %v892
    %944 = vmatprep.subr.bf16.mxu0 %v891
    %945 = vmatpush1.bf16.msra.mxu0 %v890
    %946 = vmatprep.subr.bf16.mxu0 %v889
    %947 = vmatpush1.bf16.msra.mxu0 %v888
    %948 = vmatprep.subr.bf16.mxu0 %v887
    %949 = vmatpush1.bf16.msra.mxu0 %v886
    %950 = vmatprep.subr.bf16.mxu0 %v885
    %951 = vmatpush1.bf16.msra.mxu0 %v884
    %952 = vmatprep.subr.bf16.mxu0 %v883
    %953 = vmatpush1.bf16.msra.mxu0 %v882
    %954 = vmatprep.subr.bf16.mxu0 %v881
    %955 = vmatpush1.bf16.msra.mxu0 %v880
    %956 = vmatprep.subr.bf16.mxu0 %v879
    %957 = vmatpush1.bf16.msra.mxu0 %v878
    %958 = vmatprep.subr.bf16.mxu0 %v909
    %959 = vmatpush2.bf16.msra.mxu0 %v908
    %960 = vmatprep.subr.bf16.mxu0 %v907
    %961 = vmatpush2.bf16.msra.mxu0 %v906
    %962 = vmatprep.subr.bf16.mxu0 %v905
    %963 = vmatpush2.bf16.msra.mxu0 %v904
    %964 = vmatprep.subr.bf16.mxu0 %v903
    %965 = vmatpush2.bf16.msra.mxu0 %v902
    %966 = vmatprep.subr.bf16.mxu0 %v901
    %967 = vmatpush2.bf16.msra.mxu0 %v900
    %968 = vmatprep.subr.bf16.mxu0 %v899
    %969 = vmatpush2.bf16.msra.mxu0 %v898
    %970 = vmatprep.subr.bf16.mxu0 %v897
    %971 = vmatpush2.bf16.msra.mxu0 %v896
    %972 = vmatprep.subr.bf16.mxu0 %v895
    %973 = vmatpush2.bf16.msra.mxu0 %v894
    %974 = vmatprep.mubr.bf16.mxu0 %v578
    %975 = vmatmul.mubr.bf16.gmra.mxu0 %v577
    %v976 = vpop.f32.mrf.mxu0
    %v977 = vadd.f32 %v776, %v976
    %v978 = vpop.f32.mrf.mxu0
    %v979 = vadd.f32 %v778, %v978
    %v980 = vpop.f32.mrf.mxu0
    %v981 = vpop.f32.mrf.mxu0
    %982 = vdwg.mxu0
    %v983 = vadd.f32 %v977, %v347
    %v984 = vadd.f32 %v979, %v351
    %v985 = vtanh.pop %v983
    %v986 = vtanh.pop %v984
    %s987 = smul.u32 1, 2
    %s988 = smul.addr %s987, 8
    %s989 = scalar_lea.vmem [#allocation2], %s988
    %v990 = vld [vmem:[%s989] sm:$0xff]
    %v991 = vld [vmem:[%s989 + $0x8] sm:$0xff]
    %992 = vmatprep.subr.bf16.mxu0 %v483
    %993 = vmatpush1.bf16.msra.mxu0 %v482
    %994 = vmatprep.subr.bf16.mxu0 %v481
    %995 = vmatpush1.bf16.msra.mxu0 %v480
    %996 = vmatprep.subr.bf16.mxu0 %v479
    %997 = vmatpush1.bf16.msra.mxu0 %v478
    %998 = vmatprep.subr.bf16.mxu0 %v477
    %999 = vmatpush1.bf16.msra.mxu0 %v476
    %1000 = vmatprep.subr.bf16.mxu0 %v475
    %1001 = vmatpush1.bf16.msra.mxu0 %v474
    %1002 = vmatprep.subr.bf16.mxu0 %v473
    %1003 = vmatpush1.bf16.msra.mxu0 %v472
    %1004 = vmatprep.subr.bf16.mxu0 %v471
    %1005 = vmatpush1.bf16.msra.mxu0 %v470
    %1006 = vmatprep.subr.bf16.mxu0 %v469
    %1007 = vmatpush1.bf16.msra.mxu0 %v468
    %1008 = vmatprep.subr.bf16.mxu0 %v499
    %1009 = vmatpush2.bf16.msra.mxu0 %v498
    %1010 = vmatprep.subr.bf16.mxu0 %v497
    %1011 = vmatpush2.bf16.msra.mxu0 %v496
    %1012 = vmatprep.subr.bf16.mxu0 %v495
    %1013 = vmatpush2.bf16.msra.mxu0 %v494
    %1014 = vmatprep.subr.bf16.mxu0 %v493
    %1015 = vmatpush2.bf16.msra.mxu0 %v492
    %1016 = vmatprep.subr.bf16.mxu0 %v491
    %1017 = vmatpush2.bf16.msra.mxu0 %v490
    %1018 = vmatprep.subr.bf16.mxu0 %v489
    %1019 = vmatpush2.bf16.msra.mxu0 %v488
    %1020 = vmatprep.subr.bf16.mxu0 %v487
    %1021 = vmatpush2.bf16.msra.mxu0 %v486
    %1022 = vmatprep.subr.bf16.mxu0 %v485
    %1023 = vmatpush2.bf16.msra.mxu0 %v484
    %1024 = vmatprep.mubr.bf16.mxu0 %v578
    %1025 = vmatmul.mubr.bf16.gmra.mxu0 %v577
    %v1026 = vpop.f32.mrf.mxu0
    %v1027 = vadd.f32 0.0, %v1026
    %v1028 = vpop.f32.mrf.mxu0
    %v1029 = vadd.f32 0.0, %v1028
    %v1030 = vpop.f32.mrf.mxu0
    %v1031 = vpop.f32.mrf.mxu0
    %1032 = vdwg.mxu0
    %v1033 = vadd.f32 %v990, %v1027
    %v1034 = vadd.f32 %v991, %v1029
    %v1035 = vtanh.pop %v1033
    %v1036 = vtanh.pop %v1034
    %v1037 = vpack.c.bf16 %v1035, %v1035
    %v1038 = vpack.c.bf16 %v1036, %v1036
    %v1039 = vpack.c.bf16 %v985, %v985
    %v1040 = vpack.c.bf16 %v986, %v986
    %1041 = vmatprep.subr.bf16.mxu0 %v692
    %1042 = vmatpush1.bf16.msra.mxu0 %v691
    %1043 = vmatprep.subr.bf16.mxu0 %v690
    %1044 = vmatpush1.bf16.msra.mxu0 %v689
    %1045 = vmatprep.subr.bf16.mxu0 %v688
    %1046 = vmatpush1.bf16.msra.mxu0 %v687
    %1047 = vmatprep.subr.bf16.mxu0 %v686
    %1048 = vmatpush1.bf16.msra.mxu0 %v685
    %1049 = vmatprep.subr.bf16.mxu0 %v684
    %1050 = vmatpush1.bf16.msra.mxu0 %v683
    %1051 = vmatprep.subr.bf16.mxu0 %v682
    %1052 = vmatpush1.bf16.msra.mxu0 %v681
    %1053 = vmatprep.subr.bf16.mxu0 %v680
    %1054 = vmatpush1.bf16.msra.mxu0 %v679
    %1055 = vmatprep.subr.bf16.mxu0 %v678
    %1056 = vmatpush1.bf16.msra.mxu0 %v677
    %1057 = vmatprep.subr.bf16.mxu0 %v708
    %1058 = vmatpush2.bf16.msra.mxu0 %v707
    %1059 = vmatprep.subr.bf16.mxu0 %v706
    %1060 = vmatpush2.bf16.msra.mxu0 %v705
    %1061 = vmatprep.subr.bf16.mxu0 %v704
    %1062 = vmatpush2.bf16.msra.mxu0 %v703
    %1063 = vmatprep.subr.bf16.mxu0 %v702
    %1064 = vmatpush2.bf16.msra.mxu0 %v701
    %1065 = vmatprep.subr.bf16.mxu0 %v700
    %1066 = vmatpush2.bf16.msra.mxu0 %v699
    %1067 = vmatprep.subr.bf16.mxu0 %v698
    %1068 = vmatpush2.bf16.msra.mxu0 %v697
    %1069 = vmatprep.subr.bf16.mxu0 %v696
    %1070 = vmatpush2.bf16.msra.mxu0 %v695
    %1071 = vmatprep.subr.bf16.mxu0 %v694
    %1072 = vmatpush2.bf16.msra.mxu0 %v693
    %1073 = vmatprep.mubr.bf16.mxu0 %v1040
    %1074 = vmatmul.mubr.bf16.gmra.mxu0 %v1039
    %v1075 = vpop.f32.mrf.mxu0
    %v1076 = vadd.f32 0.0, %v1075
    %v1077 = vpop.f32.mrf.mxu0
    %v1078 = vadd.f32 0.0, %v1077
    %v1079 = vpop.f32.mrf.mxu0
    %v1080 = vpop.f32.mrf.mxu0
    %1081 = vdwg.mxu0
    %1082 = vmatprep.subr.bf16.mxu0 %v893
    %1083 = vmatpush1.bf16.msra.mxu0 %v892
    %1084 = vmatprep.subr.bf16.mxu0 %v891
    %1085 = vmatpush1.bf16.msra.mxu0 %v890
    %1086 = vmatprep.subr.bf16.mxu0 %v889
    %1087 = vmatpush1.bf16.msra.mxu0 %v888
    %1088 = vmatprep.subr.bf16.mxu0 %v887
    %1089 = vmatpush1.bf16.msra.mxu0 %v886
    %1090 = vmatprep.subr.bf16.mxu0 %v885
    %1091 = vmatpush1.bf16.msra.mxu0 %v884
    %1092 = vmatprep.subr.bf16.mxu0 %v883
    %1093 = vmatpush1.bf16.msra.mxu0 %v882
    %1094 = vmatprep.subr.bf16.mxu0 %v881
    %1095 = vmatpush1.bf16.msra.mxu0 %v880
    %1096 = vmatprep.subr.bf16.mxu0 %v879
    %1097 = vmatpush1.bf16.msra.mxu0 %v878
    %1098 = vmatprep.subr.bf16.mxu0 %v909
    %1099 = vmatpush2.bf16.msra.mxu0 %v908
    %1100 = vmatprep.subr.bf16.mxu0 %v907
    %1101 = vmatpush2.bf16.msra.mxu0 %v906
    %1102 = vmatprep.subr.bf16.mxu0 %v905
    %1103 = vmatpush2.bf16.msra.mxu0 %v904
    %1104 = vmatprep.subr.bf16.mxu0 %v903
    %1105 = vmatpush2.bf16.msra.mxu0 %v902
    %1106 = vmatprep.subr.bf16.mxu0 %v901
    %1107 = vmatpush2.bf16.msra.mxu0 %v900
    %1108 = vmatprep.subr.bf16.mxu0 %v899
    %1109 = vmatpush2.bf16.msra.mxu0 %v898
    %1110 = vmatprep.subr.bf16.mxu0 %v897
    %1111 = vmatpush2.bf16.msra.mxu0 %v896
    %1112 = vmatprep.subr.bf16.mxu0 %v895
    %1113 = vmatpush2.bf16.msra.mxu0 %v894
    %1114 = vmatprep.mubr.bf16.mxu0 %v1038
    %1115 = vmatmul.mubr.bf16.gmra.mxu0 %v1037
    %v1116 = vpop.f32.mrf.mxu0
    %v1117 = vadd.f32 %v1076, %v1116
    %v1118 = vpop.f32.mrf.mxu0
    %v1119 = vadd.f32 %v1078, %v1118
    %v1120 = vpop.f32.mrf.mxu0
    %v1121 = vpop.f32.mrf.mxu0
    %1122 = vdwg.mxu0
    %v1123 = vadd.f32 %v1117, %v347
    %v1124 = vadd.f32 %v1119, %v351
    %v1125 = vtanh.pop %v1123
    %v1126 = vtanh.pop %v1124
    %s1127 = smul.u32 2, 2
    %s1128 = smul.addr %s1127, 8
    %s1129 = scalar_lea.vmem [#allocation2], %s1128
    %v1130 = vld [vmem:[%s1129] sm:$0xff]
    %v1131 = vld [vmem:[%s1129 + $0x8] sm:$0xff]
    %1132 = vmatprep.subr.bf16.mxu0 %v483
    %1133 = vmatpush1.bf16.msra.mxu0 %v482
    %1134 = vmatprep.subr.bf16.mxu0 %v481
    %1135 = vmatpush1.bf16.msra.mxu0 %v480
    %1136 = vmatprep.subr.bf16.mxu0 %v479
    %1137 = vmatpush1.bf16.msra.mxu0 %v478
    %1138 = vmatprep.subr.bf16.mxu0 %v477
    %1139 = vmatpush1.bf16.msra.mxu0 %v476
    %1140 = vmatprep.subr.bf16.mxu0 %v475
    %1141 = vmatpush1.bf16.msra.mxu0 %v474
    %1142 = vmatprep.subr.bf16.mxu0 %v473
    %1143 = vmatpush1.bf16.msra.mxu0 %v472
    %1144 = vmatprep.subr.bf16.mxu0 %v471
    %1145 = vmatpush1.bf16.msra.mxu0 %v470
    %1146 = vmatprep.subr.bf16.mxu0 %v469
    %1147 = vmatpush1.bf16.msra.mxu0 %v468
    %1148 = vmatprep.subr.bf16.mxu0 %v499
    %1149 = vmatpush2.bf16.msra.mxu0 %v498
    %1150 = vmatprep.subr.bf16.mxu0 %v497
    %1151 = vmatpush2.bf16.msra.mxu0 %v496
    %1152 = vmatprep.subr.bf16.mxu0 %v495
    %1153 = vmatpush2.bf16.msra.mxu0 %v494
    %1154 = vmatprep.subr.bf16.mxu0 %v493
    %1155 = vmatpush2.bf16.msra.mxu0 %v492
    %1156 = vmatprep.subr.bf16.mxu0 %v491
    %1157 = vmatpush2.bf16.msra.mxu0 %v490
    %1158 = vmatprep.subr.bf16.mxu0 %v489
    %1159 = vmatpush2.bf16.msra.mxu0 %v488
    %1160 = vmatprep.subr.bf16.mxu0 %v487
    %1161 = vmatpush2.bf16.msra.mxu0 %v486
    %1162 = vmatprep.subr.bf16.mxu0 %v485
    %1163 = vmatpush2.bf16.msra.mxu0 %v484
    %1164 = vmatprep.mubr.bf16.mxu0 %v1038
    %1165 = vmatmul.mubr.bf16.gmra.mxu0 %v1037
    %v1166 = vpop.f32.mrf.mxu0
    %v1167 = vadd.f32 0.0, %v1166
    %v1168 = vpop.f32.mrf.mxu0
    %v1169 = vadd.f32 0.0, %v1168
    %v1170 = vpop.f32.mrf.mxu0
    %v1171 = vpop.f32.mrf.mxu0
    %1172 = vdwg.mxu0
    %v1173 = vadd.f32 %v1130, %v1167
    %v1174 = vadd.f32 %v1131, %v1169
    %v1175 = vtanh.pop %v1173
    %v1176 = vtanh.pop %v1174
    %v1177 = vpack.c.bf16 %v1175, %v1175
    %v1178 = vpack.c.bf16 %v1176, %v1176
    %v1179 = vpack.c.bf16 %v1125, %v1125
    %v1180 = vpack.c.bf16 %v1126, %v1126
    %1181 = vmatprep.subr.bf16.mxu0 %v692
    %1182 = vmatpush1.bf16.msra.mxu0 %v691
    %1183 = vmatprep.subr.bf16.mxu0 %v690
    %1184 = vmatpush1.bf16.msra.mxu0 %v689
    %1185 = vmatprep.subr.bf16.mxu0 %v688
    %1186 = vmatpush1.bf16.msra.mxu0 %v687
    %1187 = vmatprep.subr.bf16.mxu0 %v686
    %1188 = vmatpush1.bf16.msra.mxu0 %v685
    %1189 = vmatprep.subr.bf16.mxu0 %v684
    %1190 = vmatpush1.bf16.msra.mxu0 %v683
    %1191 = vmatprep.subr.bf16.mxu0 %v682
    %1192 = vmatpush1.bf16.msra.mxu0 %v681
    %1193 = vmatprep.subr.bf16.mxu0 %v680
    %1194 = vmatpush1.bf16.msra.mxu0 %v679
    %1195 = vmatprep.subr.bf16.mxu0 %v678
    %1196 = vmatpush1.bf16.msra.mxu0 %v677
    %1197 = vmatprep.subr.bf16.mxu0 %v708
    %1198 = vmatpush2.bf16.msra.mxu0 %v707
    %1199 = vmatprep.subr.bf16.mxu0 %v706
    %1200 = vmatpush2.bf16.msra.mxu0 %v705
    %1201 = vmatprep.subr.bf16.mxu0 %v704
    %1202 = vmatpush2.bf16.msra.mxu0 %v703
    %1203 = vmatprep.subr.bf16.mxu0 %v702
    %1204 = vmatpush2.bf16.msra.mxu0 %v701
    %1205 = vmatprep.subr.bf16.mxu0 %v700
    %1206 = vmatpush2.bf16.msra.mxu0 %v699
    %1207 = vmatprep.subr.bf16.mxu0 %v698
    %1208 = vmatpush2.bf16.msra.mxu0 %v697
    %1209 = vmatprep.subr.bf16.mxu0 %v696
    %1210 = vmatpush2.bf16.msra.mxu0 %v695
    %1211 = vmatprep.subr.bf16.mxu0 %v694
    %1212 = vmatpush2.bf16.msra.mxu0 %v693
    %1213 = vmatprep.mubr.bf16.mxu0 %v1180
    %1214 = vmatmul.mubr.bf16.gmra.mxu0 %v1179
    %v1215 = vpop.f32.mrf.mxu0
    %v1216 = vadd.f32 0.0, %v1215
    %v1217 = vpop.f32.mrf.mxu0
    %v1218 = vadd.f32 0.0, %v1217
    %v1219 = vpop.f32.mrf.mxu0
    %v1220 = vpop.f32.mrf.mxu0
    %1221 = vdwg.mxu0
    %1222 = vmatprep.subr.bf16.mxu0 %v893
    %1223 = vmatpush1.bf16.msra.mxu0 %v892
    %1224 = vmatprep.subr.bf16.mxu0 %v891
    %1225 = vmatpush1.bf16.msra.mxu0 %v890
    %1226 = vmatprep.subr.bf16.mxu0 %v889
    %1227 = vmatpush1.bf16.msra.mxu0 %v888
    %1228 = vmatprep.subr.bf16.mxu0 %v887
    %1229 = vmatpush1.bf16.msra.mxu0 %v886
    %1230 = vmatprep.subr.bf16.mxu0 %v885
    %1231 = vmatpush1.bf16.msra.mxu0 %v884
    %1232 = vmatprep.subr.bf16.mxu0 %v883
    %1233 = vmatpush1.bf16.msra.mxu0 %v882
    %1234 = vmatprep.subr.bf16.mxu0 %v881
    %1235 = vmatpush1.bf16.msra.mxu0 %v880
    %1236 = vmatprep.subr.bf16.mxu0 %v879
    %1237 = vmatpush1.bf16.msra.mxu0 %v878
    %1238 = vmatprep.subr.bf16.mxu0 %v909
    %1239 = vmatpush2.bf16.msra.mxu0 %v908
    %1240 = vmatprep.subr.bf16.mxu0 %v907
    %1241 = vmatpush2.bf16.msra.mxu0 %v906
    %1242 = vmatprep.subr.bf16.mxu0 %v905
    %1243 = vmatpush2.bf16.msra.mxu0 %v904
    %1244 = vmatprep.subr.bf16.mxu0 %v903
    %1245 = vmatpush2.bf16.msra.mxu0 %v902
    %1246 = vmatprep.subr.bf16.mxu0 %v901
    %1247 = vmatpush2.bf16.msra.mxu0 %v900
    %1248 = vmatprep.subr.bf16.mxu0 %v899
    %1249 = vmatpush2.bf16.msra.mxu0 %v898
    %1250 = vmatprep.subr.bf16.mxu0 %v897
    %1251 = vmatpush2.bf16.msra.mxu0 %v896
    %1252 = vmatprep.subr.bf16.mxu0 %v895
    %1253 = vmatpush2.bf16.msra.mxu0 %v894
    %1254 = vmatprep.mubr.bf16.mxu0 %v1178
    %1255 = vmatmul.mubr.bf16.gmra.mxu0 %v1177
    %v1256 = vpop.f32.mrf.mxu0
    %v1257 = vadd.f32 %v1216, %v1256
    %v1258 = vpop.f32.mrf.mxu0
    %v1259 = vadd.f32 %v1218, %v1258
    %v1260 = vpop.f32.mrf.mxu0
    %v1261 = vpop.f32.mrf.mxu0
    %1262 = vdwg.mxu0
    %v1263 = vadd.f32 %v1257, %v347
    %v1264 = vadd.f32 %v1259, %v351
    %v1265 = vtanh.pop %v1263
    %v1266 = vtanh.pop %v1264
    %s1267 = smul.u32 3, 2
    %s1268 = smul.addr %s1267, 8
    %s1269 = scalar_lea.vmem [#allocation2], %s1268
    %v1270 = vld [vmem:[%s1269] sm:$0xff]
    %v1271 = vld [vmem:[%s1269 + $0x8] sm:$0xff]
    %1272 = vmatprep.subr.bf16.mxu0 %v483
    %1273 = vmatpush1.bf16.msra.mxu0 %v482
    %1274 = vmatprep.subr.bf16.mxu0 %v481
    %1275 = vmatpush1.bf16.msra.mxu0 %v480
    %1276 = vmatprep.subr.bf16.mxu0 %v479
    %1277 = vmatpush1.bf16.msra.mxu0 %v478
    %1278 = vmatprep.subr.bf16.mxu0 %v477
    %1279 = vmatpush1.bf16.msra.mxu0 %v476
    %1280 = vmatprep.subr.bf16.mxu0 %v475
    %1281 = vmatpush1.bf16.msra.mxu0 %v474
    %1282 = vmatprep.subr.bf16.mxu0 %v473
    %1283 = vmatpush1.bf16.msra.mxu0 %v472
    %1284 = vmatprep.subr.bf16.mxu0 %v471
    %1285 = vmatpush1.bf16.msra.mxu0 %v470
    %1286 = vmatprep.subr.bf16.mxu0 %v469
    %1287 = vmatpush1.bf16.msra.mxu0 %v468
    %1288 = vmatprep.subr.bf16.mxu0 %v499
    %1289 = vmatpush2.bf16.msra.mxu0 %v498
    %1290 = vmatprep.subr.bf16.mxu0 %v497
    %1291 = vmatpush2.bf16.msra.mxu0 %v496
    %1292 = vmatprep.subr.bf16.mxu0 %v495
    %1293 = vmatpush2.bf16.msra.mxu0 %v494
    %1294 = vmatprep.subr.bf16.mxu0 %v493
    %1295 = vmatpush2.bf16.msra.mxu0 %v492
    %1296 = vmatprep.subr.bf16.mxu0 %v491
    %1297 = vmatpush2.bf16.msra.mxu0 %v490
    %1298 = vmatprep.subr.bf16.mxu0 %v489
    %1299 = vmatpush2.bf16.msra.mxu0 %v488
    %1300 = vmatprep.subr.bf16.mxu0 %v487
    %1301 = vmatpush2.bf16.msra.mxu0 %v486
    %1302 = vmatprep.subr.bf16.mxu0 %v485
    %1303 = vmatpush2.bf16.msra.mxu0 %v484
    %1304 = vmatprep.mubr.bf16.mxu0 %v1178
    %1305 = vmatmul.mubr.bf16.gmra.mxu0 %v1177
    %v1306 = vpop.f32.mrf.mxu0
    %v1307 = vadd.f32 0.0, %v1306
    %v1308 = vpop.f32.mrf.mxu0
    %v1309 = vadd.f32 0.0, %v1308
    %v1310 = vpop.f32.mrf.mxu0
    %v1311 = vpop.f32.mrf.mxu0
    %1312 = vdwg.mxu0
    %v1313 = vadd.f32 %v1270, %v1307
    %v1314 = vadd.f32 %v1271, %v1309
    %v1315 = vtanh.pop %v1313
    %v1316 = vtanh.pop %v1314
    %v1317 = vpack.c.bf16 %v1315, %v1315
    %v1318 = vpack.c.bf16 %v1316, %v1316
    %v1319 = vpack.c.bf16 %v1265, %v1265
    %v1320 = vpack.c.bf16 %v1266, %v1266
    %1321 = vmatprep.subr.bf16.mxu0 %v692
    %1322 = vmatpush1.bf16.msra.mxu0 %v691
    %1323 = vmatprep.subr.bf16.mxu0 %v690
    %1324 = vmatpush1.bf16.msra.mxu0 %v689
    %1325 = vmatprep.subr.bf16.mxu0 %v688
    %1326 = vmatpush1.bf16.msra.mxu0 %v687
    %1327 = vmatprep.subr.bf16.mxu0 %v686
    %1328 = vmatpush1.bf16.msra.mxu0 %v685
    %1329 = vmatprep.subr.bf16.mxu0 %v684
    %1330 = vmatpush1.bf16.msra.mxu0 %v683
    %1331 = vmatprep.subr.bf16.mxu0 %v682
    %1332 = vmatpush1.bf16.msra.mxu0 %v681
    %1333 = vmatprep.subr.bf16.mxu0 %v680
    %1334 = vmatpush1.bf16.msra.mxu0 %v679
    %1335 = vmatprep.subr.bf16.mxu0 %v678
    %1336 = vmatpush1.bf16.msra.mxu0 %v677
    %1337 = vmatprep.subr.bf16.mxu0 %v708
    %1338 = vmatpush2.bf16.msra.mxu0 %v707
    %1339 = vmatprep.subr.bf16.mxu0 %v706
    %1340 = vmatpush2.bf16.msra.mxu0 %v705
    %1341 = vmatprep.subr.bf16.mxu0 %v704
    %1342 = vmatpush2.bf16.msra.mxu0 %v703
    %1343 = vmatprep.subr.bf16.mxu0 %v702
    %1344 = vmatpush2.bf16.msra.mxu0 %v701
    %1345 = vmatprep.subr.bf16.mxu0 %v700
    %1346 = vmatpush2.bf16.msra.mxu0 %v699
    %1347 = vmatprep.subr.bf16.mxu0 %v698
    %1348 = vmatpush2.bf16.msra.mxu0 %v697
    %1349 = vmatprep.subr.bf16.mxu0 %v696
    %1350 = vmatpush2.bf16.msra.mxu0 %v695
    %1351 = vmatprep.subr.bf16.mxu0 %v694
    %1352 = vmatpush2.bf16.msra.mxu0 %v693
    %1353 = vmatprep.mubr.bf16.mxu0 %v1320
    %1354 = vmatmul.mubr.bf16.gmra.mxu0 %v1319
    %v1355 = vpop.f32.mrf.mxu0
    %v1356 = vadd.f32 0.0, %v1355
    %v1357 = vpop.f32.mrf.mxu0
    %v1358 = vadd.f32 0.0, %v1357
    %v1359 = vpop.f32.mrf.mxu0
    %v1360 = vpop.f32.mrf.mxu0
    %1361 = vdwg.mxu0
    %1362 = vmatprep.subr.bf16.mxu0 %v893
    %1363 = vmatpush1.bf16.msra.mxu0 %v892
    %1364 = vmatprep.subr.bf16.mxu0 %v891
    %1365 = vmatpush1.bf16.msra.mxu0 %v890
    %1366 = vmatprep.subr.bf16.mxu0 %v889
    %1367 = vmatpush1.bf16.msra.mxu0 %v888
    %1368 = vmatprep.subr.bf16.mxu0 %v887
    %1369 = vmatpush1.bf16.msra.mxu0 %v886
    %1370 = vmatprep.subr.bf16.mxu0 %v885
    %1371 = vmatpush1.bf16.msra.mxu0 %v884
    %1372 = vmatprep.subr.bf16.mxu0 %v883
    %1373 = vmatpush1.bf16.msra.mxu0 %v882
    %1374 = vmatprep.subr.bf16.mxu0 %v881
    %1375 = vmatpush1.bf16.msra.mxu0 %v880
    %1376 = vmatprep.subr.bf16.mxu0 %v879
    %1377 = vmatpush1.bf16.msra.mxu0 %v878
    %1378 = vmatprep.subr.bf16.mxu0 %v909
    %1379 = vmatpush2.bf16.msra.mxu0 %v908
    %1380 = vmatprep.subr.bf16.mxu0 %v907
    %1381 = vmatpush2.bf16.msra.mxu0 %v906
    %1382 = vmatprep.subr.bf16.mxu0 %v905
    %1383 = vmatpush2.bf16.msra.mxu0 %v904
    %1384 = vmatprep.subr.bf16.mxu0 %v903
    %1385 = vmatpush2.bf16.msra.mxu0 %v902
    %1386 = vmatprep.subr.bf16.mxu0 %v901
    %1387 = vmatpush2.bf16.msra.mxu0 %v900
    %1388 = vmatprep.subr.bf16.mxu0 %v899
    %1389 = vmatpush2.bf16.msra.mxu0 %v898
    %1390 = vmatprep.subr.bf16.mxu0 %v897
    %1391 = vmatpush2.bf16.msra.mxu0 %v896
    %1392 = vmatprep.subr.bf16.mxu0 %v895
    %1393 = vmatpush2.bf16.msra.mxu0 %v894
    %1394 = vmatprep.mubr.bf16.mxu0 %v1318
    %1395 = vmatmul.mubr.bf16.gmra.mxu0 %v1317
    %v1396 = vpop.f32.mrf.mxu0
    %v1397 = vadd.f32 %v1356, %v1396
    %v1398 = vpop.f32.mrf.mxu0
    %v1399 = vadd.f32 %v1358, %v1398
    %v1400 = vpop.f32.mrf.mxu0
    %v1401 = vpop.f32.mrf.mxu0
    %1402 = vdwg.mxu0
    %v1403 = vadd.f32 %v1397, %v347
    %v1404 = vadd.f32 %v1399, %v351
    %v1405 = vtanh.pop %v1403
    %v1406 = vtanh.pop %v1404
    %s1407 = smul.u32 4, 2
    %s1408 = smul.addr %s1407, 8
    %s1409 = scalar_lea.vmem [#allocation2], %s1408
    %v1410 = vld [vmem:[%s1409] sm:$0xff]
    %v1411 = vld [vmem:[%s1409 + $0x8] sm:$0xff]
    %1412 = vmatprep.subr.bf16.mxu0 %v483
    %1413 = vmatpush1.bf16.msra.mxu0 %v482
    %1414 = vmatprep.subr.bf16.mxu0 %v481
    %1415 = vmatpush1.bf16.msra.mxu0 %v480
    %1416 = vmatprep.subr.bf16.mxu0 %v479
    %1417 = vmatpush1.bf16.msra.mxu0 %v478
    %1418 = vmatprep.subr.bf16.mxu0 %v477
    %1419 = vmatpush1.bf16.msra.mxu0 %v476
    %1420 = vmatprep.subr.bf16.mxu0 %v475
    %1421 = vmatpush1.bf16.msra.mxu0 %v474
    %1422 = vmatprep.subr.bf16.mxu0 %v473
    %1423 = vmatpush1.bf16.msra.mxu0 %v472
    %1424 = vmatprep.subr.bf16.mxu0 %v471
    %1425 = vmatpush1.bf16.msra.mxu0 %v470
    %1426 = vmatprep.subr.bf16.mxu0 %v469
    %1427 = vmatpush1.bf16.msra.mxu0 %v468
    %1428 = vmatprep.subr.bf16.mxu0 %v499
    %1429 = vmatpush2.bf16.msra.mxu0 %v498
    %1430 = vmatprep.subr.bf16.mxu0 %v497
    %1431 = vmatpush2.bf16.msra.mxu0 %v496
    %1432 = vmatprep.subr.bf16.mxu0 %v495
    %1433 = vmatpush2.bf16.msra.mxu0 %v494
    %1434 = vmatprep.subr.bf16.mxu0 %v493
    %1435 = vmatpush2.bf16.msra.mxu0 %v492
    %1436 = vmatprep.subr.bf16.mxu0 %v491
    %1437 = vmatpush2.bf16.msra.mxu0 %v490
    %1438 = vmatprep.subr.bf16.mxu0 %v489
    %1439 = vmatpush2.bf16.msra.mxu0 %v488
    %1440 = vmatprep.subr.bf16.mxu0 %v487
    %1441 = vmatpush2.bf16.msra.mxu0 %v486
    %1442 = vmatprep.subr.bf16.mxu0 %v485
    %1443 = vmatpush2.bf16.msra.mxu0 %v484
    %1444 = vmatprep.mubr.bf16.mxu0 %v1318
    %1445 = vmatmul.mubr.bf16.gmra.mxu0 %v1317
    %v1446 = vpop.f32.mrf.mxu0
    %v1447 = vadd.f32 0.0, %v1446
    %v1448 = vpop.f32.mrf.mxu0
    %v1449 = vadd.f32 0.0, %v1448
    %v1450 = vpop.f32.mrf.mxu0
    %v1451 = vpop.f32.mrf.mxu0
    %1452 = vdwg.mxu0
    %v1453 = vadd.f32 %v1410, %v1447
    %v1454 = vadd.f32 %v1411, %v1449
    %v1455 = vtanh.pop %v1453
    %v1456 = vtanh.pop %v1454
    %v1457 = vpack.c.bf16 %v1455, %v1455
    %v1458 = vpack.c.bf16 %v1456, %v1456
    %v1459 = vpack.c.bf16 %v1405, %v1405
    %v1460 = vpack.c.bf16 %v1406, %v1406
    %1461 = vmatprep.subr.bf16.mxu0 %v692
    %1462 = vmatpush1.bf16.msra.mxu0 %v691
    %1463 = vmatprep.subr.bf16.mxu0 %v690
    %1464 = vmatpush1.bf16.msra.mxu0 %v689
    %1465 = vmatprep.subr.bf16.mxu0 %v688
    %1466 = vmatpush1.bf16.msra.mxu0 %v687
    %1467 = vmatprep.subr.bf16.mxu0 %v686
    %1468 = vmatpush1.bf16.msra.mxu0 %v685
    %1469 = vmatprep.subr.bf16.mxu0 %v684
    %1470 = vmatpush1.bf16.msra.mxu0 %v683
    %1471 = vmatprep.subr.bf16.mxu0 %v682
    %1472 = vmatpush1.bf16.msra.mxu0 %v681
    %1473 = vmatprep.subr.bf16.mxu0 %v680
    %1474 = vmatpush1.bf16.msra.mxu0 %v679
    %1475 = vmatprep.subr.bf16.mxu0 %v678
    %1476 = vmatpush1.bf16.msra.mxu0 %v677
    %1477 = vmatprep.subr.bf16.mxu0 %v708
    %1478 = vmatpush2.bf16.msra.mxu0 %v707
    %1479 = vmatprep.subr.bf16.mxu0 %v706
    %1480 = vmatpush2.bf16.msra.mxu0 %v705
    %1481 = vmatprep.subr.bf16.mxu0 %v704
    %1482 = vmatpush2.bf16.msra.mxu0 %v703
    %1483 = vmatprep.subr.bf16.mxu0 %v702
    %1484 = vmatpush2.bf16.msra.mxu0 %v701
    %1485 = vmatprep.subr.bf16.mxu0 %v700
    %1486 = vmatpush2.bf16.msra.mxu0 %v699
    %1487 = vmatprep.subr.bf16.mxu0 %v698
    %1488 = vmatpush2.bf16.msra.mxu0 %v697
    %1489 = vmatprep.subr.bf16.mxu0 %v696
    %1490 = vmatpush2.bf16.msra.mxu0 %v695
    %1491 = vmatprep.subr.bf16.mxu0 %v694
    %1492 = vmatpush2.bf16.msra.mxu0 %v693
    %1493 = vmatprep.mubr.bf16.mxu0 %v1460
    %1494 = vmatmul.mubr.bf16.gmra.mxu0 %v1459
    %v1495 = vpop.f32.mrf.mxu0
    %v1496 = vadd.f32 0.0, %v1495
    %v1497 = vpop.f32.mrf.mxu0
    %v1498 = vadd.f32 0.0, %v1497
    %v1499 = vpop.f32.mrf.mxu0
    %v1500 = vpop.f32.mrf.mxu0
    %1501 = vdwg.mxu0
    %1502 = vmatprep.subr.bf16.mxu0 %v893
    %1503 = vmatpush1.bf16.msra.mxu0 %v892
    %1504 = vmatprep.subr.bf16.mxu0 %v891
    %1505 = vmatpush1.bf16.msra.mxu0 %v890
    %1506 = vmatprep.subr.bf16.mxu0 %v889
    %1507 = vmatpush1.bf16.msra.mxu0 %v888
    %1508 = vmatprep.subr.bf16.mxu0 %v887
    %1509 = vmatpush1.bf16.msra.mxu0 %v886
    %1510 = vmatprep.subr.bf16.mxu0 %v885
    %1511 = vmatpush1.bf16.msra.mxu0 %v884
    %1512 = vmatprep.subr.bf16.mxu0 %v883
    %1513 = vmatpush1.bf16.msra.mxu0 %v882
    %1514 = vmatprep.subr.bf16.mxu0 %v881
    %1515 = vmatpush1.bf16.msra.mxu0 %v880
    %1516 = vmatprep.subr.bf16.mxu0 %v879
    %1517 = vmatpush1.bf16.msra.mxu0 %v878
    %1518 = vmatprep.subr.bf16.mxu0 %v909
    %1519 = vmatpush2.bf16.msra.mxu0 %v908
    %1520 = vmatprep.subr.bf16.mxu0 %v907
    %1521 = vmatpush2.bf16.msra.mxu0 %v906
    %1522 = vmatprep.subr.bf16.mxu0 %v905
    %1523 = vmatpush2.bf16.msra.mxu0 %v904
    %1524 = vmatprep.subr.bf16.mxu0 %v903
    %1525 = vmatpush2.bf16.msra.mxu0 %v902
    %1526 = vmatprep.subr.bf16.mxu0 %v901
    %1527 = vmatpush2.bf16.msra.mxu0 %v900
    %1528 = vmatprep.subr.bf16.mxu0 %v899
    %1529 = vmatpush2.bf16.msra.mxu0 %v898
    %1530 = vmatprep.subr.bf16.mxu0 %v897
    %1531 = vmatpush2.bf16.msra.mxu0 %v896
    %1532 = vmatprep.subr.bf16.mxu0 %v895
    %1533 = vmatpush2.bf16.msra.mxu0 %v894
    %1534 = vmatprep.mubr.bf16.mxu0 %v1458
    %1535 = vmatmul.mubr.bf16.gmra.mxu0 %v1457
    %v1536 = vpop.f32.mrf.mxu0
    %v1537 = vadd.f32 %v1496, %v1536
    %v1538 = vpop.f32.mrf.mxu0
    %v1539 = vadd.f32 %v1498, %v1538
    %v1540 = vpop.f32.mrf.mxu0
    %v1541 = vpop.f32.mrf.mxu0
    %1542 = vdwg.mxu0
    %v1543 = vadd.f32 %v1537, %v347
    %v1544 = vadd.f32 %v1539, %v351
    %v1545 = vtanh.pop %v1543
    %v1546 = vtanh.pop %v1544
    %s1547 = smul.u32 5, 2
    %s1548 = smul.addr %s1547, 8
    %s1549 = scalar_lea.vmem [#allocation2], %s1548
    %v1550 = vld [vmem:[%s1549] sm:$0xff]
    %v1551 = vld [vmem:[%s1549 + $0x8] sm:$0xff]
    %1552 = vmatprep.subr.bf16.mxu0 %v483
    %1553 = vmatpush1.bf16.msra.mxu0 %v482
    %1554 = vmatprep.subr.bf16.mxu0 %v481
    %1555 = vmatpush1.bf16.msra.mxu0 %v480
    %1556 = vmatprep.subr.bf16.mxu0 %v479
    %1557 = vmatpush1.bf16.msra.mxu0 %v478
    %1558 = vmatprep.subr.bf16.mxu0 %v477
    %1559 = vmatpush1.bf16.msra.mxu0 %v476
    %1560 = vmatprep.subr.bf16.mxu0 %v475
    %1561 = vmatpush1.bf16.msra.mxu0 %v474
    %1562 = vmatprep.subr.bf16.mxu0 %v473
    %1563 = vmatpush1.bf16.msra.mxu0 %v472
    %1564 = vmatprep.subr.bf16.mxu0 %v471
    %1565 = vmatpush1.bf16.msra.mxu0 %v470
    %1566 = vmatprep.subr.bf16.mxu0 %v469
    %1567 = vmatpush1.bf16.msra.mxu0 %v468
    %1568 = vmatprep.subr.bf16.mxu0 %v499
    %1569 = vmatpush2.bf16.msra.mxu0 %v498
    %1570 = vmatprep.subr.bf16.mxu0 %v497
    %1571 = vmatpush2.bf16.msra.mxu0 %v496
    %1572 = vmatprep.subr.bf16.mxu0 %v495
    %1573 = vmatpush2.bf16.msra.mxu0 %v494
    %1574 = vmatprep.subr.bf16.mxu0 %v493
    %1575 = vmatpush2.bf16.msra.mxu0 %v492
    %1576 = vmatprep.subr.bf16.mxu0 %v491
    %1577 = vmatpush2.bf16.msra.mxu0 %v490
    %1578 = vmatprep.subr.bf16.mxu0 %v489
    %1579 = vmatpush2.bf16.msra.mxu0 %v488
    %1580 = vmatprep.subr.bf16.mxu0 %v487
    %1581 = vmatpush2.bf16.msra.mxu0 %v486
    %1582 = vmatprep.subr.bf16.mxu0 %v485
    %1583 = vmatpush2.bf16.msra.mxu0 %v484
    %1584 = vmatprep.mubr.bf16.mxu0 %v1458
    %1585 = vmatmul.mubr.bf16.gmra.mxu0 %v1457
    %v1586 = vpop.f32.mrf.mxu0
    %v1587 = vadd.f32 0.0, %v1586
    %v1588 = vpop.f32.mrf.mxu0
    %v1589 = vadd.f32 0.0, %v1588
    %v1590 = vpop.f32.mrf.mxu0
    %v1591 = vpop.f32.mrf.mxu0
    %1592 = vdwg.mxu0
    %v1593 = vadd.f32 %v1550, %v1587
    %v1594 = vadd.f32 %v1551, %v1589
    %v1595 = vtanh.pop %v1593
    %v1596 = vtanh.pop %v1594
    %v1597 = vpack.c.bf16 %v1595, %v1595
    %v1598 = vpack.c.bf16 %v1596, %v1596
    %v1599 = vpack.c.bf16 %v1545, %v1545
    %v1600 = vpack.c.bf16 %v1546, %v1546
    %1601 = vmatprep.subr.bf16.mxu0 %v692
    %1602 = vmatpush1.bf16.msra.mxu0 %v691
    %1603 = vmatprep.subr.bf16.mxu0 %v690
    %1604 = vmatpush1.bf16.msra.mxu0 %v689
    %1605 = vmatprep.subr.bf16.mxu0 %v688
    %1606 = vmatpush1.bf16.msra.mxu0 %v687
    %1607 = vmatprep.subr.bf16.mxu0 %v686
    %1608 = vmatpush1.bf16.msra.mxu0 %v685
    %1609 = vmatprep.subr.bf16.mxu0 %v684
    %1610 = vmatpush1.bf16.msra.mxu0 %v683
    %1611 = vmatprep.subr.bf16.mxu0 %v682
    %1612 = vmatpush1.bf16.msra.mxu0 %v681
    %1613 = vmatprep.subr.bf16.mxu0 %v680
    %1614 = vmatpush1.bf16.msra.mxu0 %v679
    %1615 = vmatprep.subr.bf16.mxu0 %v678
    %1616 = vmatpush1.bf16.msra.mxu0 %v677
    %1617 = vmatprep.subr.bf16.mxu0 %v708
    %1618 = vmatpush2.bf16.msra.mxu0 %v707
    %1619 = vmatprep.subr.bf16.mxu0 %v706
    %1620 = vmatpush2.bf16.msra.mxu0 %v705
    %1621 = vmatprep.subr.bf16.mxu0 %v704
    %1622 = vmatpush2.bf16.msra.mxu0 %v703
    %1623 = vmatprep.subr.bf16.mxu0 %v702
    %1624 = vmatpush2.bf16.msra.mxu0 %v701
    %1625 = vmatprep.subr.bf16.mxu0 %v700
    %1626 = vmatpush2.bf16.msra.mxu0 %v699
    %1627 = vmatprep.subr.bf16.mxu0 %v698
    %1628 = vmatpush2.bf16.msra.mxu0 %v697
    %1629 = vmatprep.subr.bf16.mxu0 %v696
    %1630 = vmatpush2.bf16.msra.mxu0 %v695
    %1631 = vmatprep.subr.bf16.mxu0 %v694
    %1632 = vmatpush2.bf16.msra.mxu0 %v693
    %1633 = vmatprep.mubr.bf16.mxu0 %v1600
    %1634 = vmatmul.mubr.bf16.gmra.mxu0 %v1599
    %v1635 = vpop.f32.mrf.mxu0
    %v1636 = vadd.f32 0.0, %v1635
    %v1637 = vpop.f32.mrf.mxu0
    %v1638 = vadd.f32 0.0, %v1637
    %v1639 = vpop.f32.mrf.mxu0
    %v1640 = vpop.f32.mrf.mxu0
    %1641 = vdwg.mxu0
    %1642 = vmatprep.subr.bf16.mxu0 %v893
    %1643 = vmatpush1.bf16.msra.mxu0 %v892
    %1644 = vmatprep.subr.bf16.mxu0 %v891
    %1645 = vmatpush1.bf16.msra.mxu0 %v890
    %1646 = vmatprep.subr.bf16.mxu0 %v889
    %1647 = vmatpush1.bf16.msra.mxu0 %v888
    %1648 = vmatprep.subr.bf16.mxu0 %v887
    %1649 = vmatpush1.bf16.msra.mxu0 %v886
    %1650 = vmatprep.subr.bf16.mxu0 %v885
    %1651 = vmatpush1.bf16.msra.mxu0 %v884
    %1652 = vmatprep.subr.bf16.mxu0 %v883
    %1653 = vmatpush1.bf16.msra.mxu0 %v882
    %1654 = vmatprep.subr.bf16.mxu0 %v881
    %1655 = vmatpush1.bf16.msra.mxu0 %v880
    %1656 = vmatprep.subr.bf16.mxu0 %v879
    %1657 = vmatpush1.bf16.msra.mxu0 %v878
    %1658 = vmatprep.subr.bf16.mxu0 %v909
    %1659 = vmatpush2.bf16.msra.mxu0 %v908
    %1660 = vmatprep.subr.bf16.mxu0 %v907
    %1661 = vmatpush2.bf16.msra.mxu0 %v906
    %1662 = vmatprep.subr.bf16.mxu0 %v905
    %1663 = vmatpush2.bf16.msra.mxu0 %v904
    %1664 = vmatprep.subr.bf16.mxu0 %v903
    %1665 = vmatpush2.bf16.msra.mxu0 %v902
    %1666 = vmatprep.subr.bf16.mxu0 %v901
    %1667 = vmatpush2.bf16.msra.mxu0 %v900
    %1668 = vmatprep.subr.bf16.mxu0 %v899
    %1669 = vmatpush2.bf16.msra.mxu0 %v898
    %1670 = vmatprep.subr.bf16.mxu0 %v897
    %1671 = vmatpush2.bf16.msra.mxu0 %v896
    %1672 = vmatprep.subr.bf16.mxu0 %v895
    %1673 = vmatpush2.bf16.msra.mxu0 %v894
    %1674 = vmatprep.mubr.bf16.mxu0 %v1598
    %1675 = vmatmul.mubr.bf16.gmra.mxu0 %v1597
    %v1676 = vpop.f32.mrf.mxu0
    %v1677 = vadd.f32 %v1636, %v1676
    %v1678 = vpop.f32.mrf.mxu0
    %v1679 = vadd.f32 %v1638, %v1678
    %v1680 = vpop.f32.mrf.mxu0
    %v1681 = vpop.f32.mrf.mxu0
    %1682 = vdwg.mxu0
    %v1683 = vadd.f32 %v1677, %v347
    %v1684 = vadd.f32 %v1679, %v351
    %v1685 = vtanh.pop %v1683
    %v1686 = vtanh.pop %v1684
    %s1687 = smul.u32 6, 2
    %s1688 = smul.addr %s1687, 8
    %s1689 = scalar_lea.vmem [#allocation2], %s1688
    %v1690 = vld [vmem:[%s1689] sm:$0xff]
    %v1691 = vld [vmem:[%s1689 + $0x8] sm:$0xff]
    %1692 = vmatprep.subr.bf16.mxu0 %v483
    %1693 = vmatpush1.bf16.msra.mxu0 %v482
    %1694 = vmatprep.subr.bf16.mxu0 %v481
    %1695 = vmatpush1.bf16.msra.mxu0 %v480
    %1696 = vmatprep.subr.bf16.mxu0 %v479
    %1697 = vmatpush1.bf16.msra.mxu0 %v478
    %1698 = vmatprep.subr.bf16.mxu0 %v477
    %1699 = vmatpush1.bf16.msra.mxu0 %v476
    %1700 = vmatprep.subr.bf16.mxu0 %v475
    %1701 = vmatpush1.bf16.msra.mxu0 %v474
    %1702 = vmatprep.subr.bf16.mxu0 %v473
    %1703 = vmatpush1.bf16.msra.mxu0 %v472
    %1704 = vmatprep.subr.bf16.mxu0 %v471
    %1705 = vmatpush1.bf16.msra.mxu0 %v470
    %1706 = vmatprep.subr.bf16.mxu0 %v469
    %1707 = vmatpush1.bf16.msra.mxu0 %v468
    %1708 = vmatprep.subr.bf16.mxu0 %v499
    %1709 = vmatpush2.bf16.msra.mxu0 %v498
    %1710 = vmatprep.subr.bf16.mxu0 %v497
    %1711 = vmatpush2.bf16.msra.mxu0 %v496
    %1712 = vmatprep.subr.bf16.mxu0 %v495
    %1713 = vmatpush2.bf16.msra.mxu0 %v494
    %1714 = vmatprep.subr.bf16.mxu0 %v493
    %1715 = vmatpush2.bf16.msra.mxu0 %v492
    %1716 = vmatprep.subr.bf16.mxu0 %v491
    %1717 = vmatpush2.bf16.msra.mxu0 %v490
    %1718 = vmatprep.subr.bf16.mxu0 %v489
    %1719 = vmatpush2.bf16.msra.mxu0 %v488
    %1720 = vmatprep.subr.bf16.mxu0 %v487
    %1721 = vmatpush2.bf16.msra.mxu0 %v486
    %1722 = vmatprep.subr.bf16.mxu0 %v485
    %1723 = vmatpush2.bf16.msra.mxu0 %v484
    %1724 = vmatprep.mubr.bf16.mxu0 %v1598
    %1725 = vmatmul.mubr.bf16.gmra.mxu0 %v1597
    %v1726 = vpop.f32.mrf.mxu0
    %v1727 = vadd.f32 0.0, %v1726
    %v1728 = vpop.f32.mrf.mxu0
    %v1729 = vadd.f32 0.0, %v1728
    %v1730 = vpop.f32.mrf.mxu0
    %v1731 = vpop.f32.mrf.mxu0
    %1732 = vdwg.mxu0
    %v1733 = vadd.f32 %v1690, %v1727
    %v1734 = vadd.f32 %v1691, %v1729
    %v1735 = vtanh.pop %v1733
    %v1736 = vtanh.pop %v1734
    %v1737 = vpack.c.bf16 %v1735, %v1735
    %v1738 = vpack.c.bf16 %v1736, %v1736
    %v1739 = vpack.c.bf16 %v1685, %v1685
    %v1740 = vpack.c.bf16 %v1686, %v1686
    %1741 = vmatprep.subr.bf16.mxu0 %v692
    %1742 = vmatpush1.bf16.msra.mxu0 %v691
    %1743 = vmatprep.subr.bf16.mxu0 %v690
    %1744 = vmatpush1.bf16.msra.mxu0 %v689
    %1745 = vmatprep.subr.bf16.mxu0 %v688
    %1746 = vmatpush1.bf16.msra.mxu0 %v687
    %1747 = vmatprep.subr.bf16.mxu0 %v686
    %1748 = vmatpush1.bf16.msra.mxu0 %v685
    %1749 = vmatprep.subr.bf16.mxu0 %v684
    %1750 = vmatpush1.bf16.msra.mxu0 %v683
    %1751 = vmatprep.subr.bf16.mxu0 %v682
    %1752 = vmatpush1.bf16.msra.mxu0 %v681
    %1753 = vmatprep.subr.bf16.mxu0 %v680
    %1754 = vmatpush1.bf16.msra.mxu0 %v679
    %1755 = vmatprep.subr.bf16.mxu0 %v678
    %1756 = vmatpush1.bf16.msra.mxu0 %v677
    %1757 = vmatprep.subr.bf16.mxu0 %v708
    %1758 = vmatpush2.bf16.msra.mxu0 %v707
    %1759 = vmatprep.subr.bf16.mxu0 %v706
    %1760 = vmatpush2.bf16.msra.mxu0 %v705
    %1761 = vmatprep.subr.bf16.mxu0 %v704
    %1762 = vmatpush2.bf16.msra.mxu0 %v703
    %1763 = vmatprep.subr.bf16.mxu0 %v702
    %1764 = vmatpush2.bf16.msra.mxu0 %v701
    %1765 = vmatprep.subr.bf16.mxu0 %v700
    %1766 = vmatpush2.bf16.msra.mxu0 %v699
    %1767 = vmatprep.subr.bf16.mxu0 %v698
    %1768 = vmatpush2.bf16.msra.mxu0 %v697
    %1769 = vmatprep.subr.bf16.mxu0 %v696
    %1770 = vmatpush2.bf16.msra.mxu0 %v695
    %1771 = vmatprep.subr.bf16.mxu0 %v694
    %1772 = vmatpush2.bf16.msra.mxu0 %v693
    %1773 = vmatprep.mubr.bf16.mxu0 %v1740
    %1774 = vmatmul.mubr.bf16.gmra.mxu0 %v1739
    %v1775 = vpop.f32.mrf.mxu0
    %v1776 = vadd.f32 0.0, %v1775
    %v1777 = vpop.f32.mrf.mxu0
    %v1778 = vadd.f32 0.0, %v1777
    %v1779 = vpop.f32.mrf.mxu0
    %v1780 = vpop.f32.mrf.mxu0
    %1781 = vdwg.mxu0
    %1782 = vmatprep.subr.bf16.mxu0 %v893
    %1783 = vmatpush1.bf16.msra.mxu0 %v892
    %1784 = vmatprep.subr.bf16.mxu0 %v891
    %1785 = vmatpush1.bf16.msra.mxu0 %v890
    %1786 = vmatprep.subr.bf16.mxu0 %v889
    %1787 = vmatpush1.bf16.msra.mxu0 %v888
    %1788 = vmatprep.subr.bf16.mxu0 %v887
    %1789 = vmatpush1.bf16.msra.mxu0 %v886
    %1790 = vmatprep.subr.bf16.mxu0 %v885
    %1791 = vmatpush1.bf16.msra.mxu0 %v884
    %1792 = vmatprep.subr.bf16.mxu0 %v883
    %1793 = vmatpush1.bf16.msra.mxu0 %v882
    %1794 = vmatprep.subr.bf16.mxu0 %v881
    %1795 = vmatpush1.bf16.msra.mxu0 %v880
    %1796 = vmatprep.subr.bf16.mxu0 %v879
    %1797 = vmatpush1.bf16.msra.mxu0 %v878
    %1798 = vmatprep.subr.bf16.mxu0 %v909
    %1799 = vmatpush2.bf16.msra.mxu0 %v908
    %1800 = vmatprep.subr.bf16.mxu0 %v907
    %1801 = vmatpush2.bf16.msra.mxu0 %v906
    %1802 = vmatprep.subr.bf16.mxu0 %v905
    %1803 = vmatpush2.bf16.msra.mxu0 %v904
    %1804 = vmatprep.subr.bf16.mxu0 %v903
    %1805 = vmatpush2.bf16.msra.mxu0 %v902
    %1806 = vmatprep.subr.bf16.mxu0 %v901
    %1807 = vmatpush2.bf16.msra.mxu0 %v900
    %1808 = vmatprep.subr.bf16.mxu0 %v899
    %1809 = vmatpush2.bf16.msra.mxu0 %v898
    %1810 = vmatprep.subr.bf16.mxu0 %v897
    %1811 = vmatpush2.bf16.msra.mxu0 %v896
    %1812 = vmatprep.subr.bf16.mxu0 %v895
    %1813 = vmatpush2.bf16.msra.mxu0 %v894
    %1814 = vmatprep.mubr.bf16.mxu0 %v1738
    %1815 = vmatmul.mubr.bf16.gmra.mxu0 %v1737
    %v1816 = vpop.f32.mrf.mxu0
    %v1817 = vadd.f32 %v1776, %v1816
    %v1818 = vpop.f32.mrf.mxu0
    %v1819 = vadd.f32 %v1778, %v1818
    %v1820 = vpop.f32.mrf.mxu0
    %v1821 = vpop.f32.mrf.mxu0
    %1822 = vdwg.mxu0
    %v1823 = vadd.f32 %v1817, %v347
    %v1824 = vadd.f32 %v1819, %v351
    %v1825 = vtanh.pop %v1823
    %v1826 = vtanh.pop %v1824
    %s1827 = smul.u32 7, 2
    %s1828 = smul.addr %s1827, 8
    %s1829 = scalar_lea.vmem [#allocation2], %s1828
    %v1830 = vld [vmem:[%s1829] sm:$0xff]
    %v1831 = vld [vmem:[%s1829 + $0x8] sm:$0xff]
    %1832 = vmatprep.subr.bf16.mxu0 %v483
    %1833 = vmatpush1.bf16.msra.mxu0 %v482
    %1834 = vmatprep.subr.bf16.mxu0 %v481
    %1835 = vmatpush1.bf16.msra.mxu0 %v480
    %1836 = vmatprep.subr.bf16.mxu0 %v479
    %1837 = vmatpush1.bf16.msra.mxu0 %v478
    %1838 = vmatprep.subr.bf16.mxu0 %v477
    %1839 = vmatpush1.bf16.msra.mxu0 %v476
    %1840 = vmatprep.subr.bf16.mxu0 %v475
    %1841 = vmatpush1.bf16.msra.mxu0 %v474
    %1842 = vmatprep.subr.bf16.mxu0 %v473
    %1843 = vmatpush1.bf16.msra.mxu0 %v472
    %1844 = vmatprep.subr.bf16.mxu0 %v471
    %1845 = vmatpush1.bf16.msra.mxu0 %v470
    %1846 = vmatprep.subr.bf16.mxu0 %v469
    %1847 = vmatpush1.bf16.msra.mxu0 %v468
    %1848 = vmatprep.subr.bf16.mxu0 %v499
    %1849 = vmatpush2.bf16.msra.mxu0 %v498
    %1850 = vmatprep.subr.bf16.mxu0 %v497
    %1851 = vmatpush2.bf16.msra.mxu0 %v496
    %1852 = vmatprep.subr.bf16.mxu0 %v495
    %1853 = vmatpush2.bf16.msra.mxu0 %v494
    %1854 = vmatprep.subr.bf16.mxu0 %v493
    %1855 = vmatpush2.bf16.msra.mxu0 %v492
    %1856 = vmatprep.subr.bf16.mxu0 %v491
    %1857 = vmatpush2.bf16.msra.mxu0 %v490
    %1858 = vmatprep.subr.bf16.mxu0 %v489
    %1859 = vmatpush2.bf16.msra.mxu0 %v488
    %1860 = vmatprep.subr.bf16.mxu0 %v487
    %1861 = vmatpush2.bf16.msra.mxu0 %v486
    %1862 = vmatprep.subr.bf16.mxu0 %v485
    %1863 = vmatpush2.bf16.msra.mxu0 %v484
    %1864 = vmatprep.mubr.bf16.mxu0 %v1738
    %1865 = vmatmul.mubr.bf16.gmra.mxu0 %v1737
    %v1866 = vpop.f32.mrf.mxu0
    %v1867 = vadd.f32 0.0, %v1866
    %v1868 = vpop.f32.mrf.mxu0
    %v1869 = vadd.f32 0.0, %v1868
    %v1870 = vpop.f32.mrf.mxu0
    %v1871 = vpop.f32.mrf.mxu0
    %1872 = vdwg.mxu0
    %v1873 = vadd.f32 %v1830, %v1867
    %v1874 = vadd.f32 %v1831, %v1869
    %v1875 = vtanh.pop %v1873
    %v1876 = vtanh.pop %v1874
    %v1877 = vpack.c.bf16 %v1875, %v1875
    %v1878 = vpack.c.bf16 %v1876, %v1876
    %v1879 = vpack.c.bf16 %v1825, %v1825
    %v1880 = vpack.c.bf16 %v1826, %v1826
    %1881 = vmatprep.subr.bf16.mxu0 %v692
    %1882 = vmatpush1.bf16.msra.mxu0 %v691
    %1883 = vmatprep.subr.bf16.mxu0 %v690
    %1884 = vmatpush1.bf16.msra.mxu0 %v689
    %1885 = vmatprep.subr.bf16.mxu0 %v688
    %1886 = vmatpush1.bf16.msra.mxu0 %v687
    %1887 = vmatprep.subr.bf16.mxu0 %v686
    %1888 = vmatpush1.bf16.msra.mxu0 %v685
    %1889 = vmatprep.subr.bf16.mxu0 %v684
    %1890 = vmatpush1.bf16.msra.mxu0 %v683
    %1891 = vmatprep.subr.bf16.mxu0 %v682
    %1892 = vmatpush1.bf16.msra.mxu0 %v681
    %1893 = vmatprep.subr.bf16.mxu0 %v680
    %1894 = vmatpush1.bf16.msra.mxu0 %v679
    %1895 = vmatprep.subr.bf16.mxu0 %v678
    %1896 = vmatpush1.bf16.msra.mxu0 %v677
    %1897 = vmatprep.subr.bf16.mxu0 %v708
    %1898 = vmatpush2.bf16.msra.mxu0 %v707
    %1899 = vmatprep.subr.bf16.mxu0 %v706
    %1900 = vmatpush2.bf16.msra.mxu0 %v705
    %1901 = vmatprep.subr.bf16.mxu0 %v704
    %1902 = vmatpush2.bf16.msra.mxu0 %v703
    %1903 = vmatprep.subr.bf16.mxu0 %v702
    %1904 = vmatpush2.bf16.msra.mxu0 %v701
    %1905 = vmatprep.subr.bf16.mxu0 %v700
    %1906 = vmatpush2.bf16.msra.mxu0 %v699
    %1907 = vmatprep.subr.bf16.mxu0 %v698
    %1908 = vmatpush2.bf16.msra.mxu0 %v697
    %1909 = vmatprep.subr.bf16.mxu0 %v696
    %1910 = vmatpush2.bf16.msra.mxu0 %v695
    %1911 = vmatprep.subr.bf16.mxu0 %v694
    %1912 = vmatpush2.bf16.msra.mxu0 %v693
    %1913 = vmatprep.mubr.bf16.mxu0 %v1880
    %1914 = vmatmul.mubr.bf16.gmra.mxu0 %v1879
    %v1915 = vpop.f32.mrf.mxu0
    %v1916 = vadd.f32 0.0, %v1915
    %v1917 = vpop.f32.mrf.mxu0
    %v1918 = vadd.f32 0.0, %v1917
    %v1919 = vpop.f32.mrf.mxu0
    %v1920 = vpop.f32.mrf.mxu0
    %1921 = vdwg.mxu0
    %1922 = vmatprep.subr.bf16.mxu0 %v893
    %1923 = vmatpush1.bf16.msra.mxu0 %v892
    %1924 = vmatprep.subr.bf16.mxu0 %v891
    %1925 = vmatpush1.bf16.msra.mxu0 %v890
    %1926 = vmatprep.subr.bf16.mxu0 %v889
    %1927 = vmatpush1.bf16.msra.mxu0 %v888
    %1928 = vmatprep.subr.bf16.mxu0 %v887
    %1929 = vmatpush1.bf16.msra.mxu0 %v886
    %1930 = vmatprep.subr.bf16.mxu0 %v885
    %1931 = vmatpush1.bf16.msra.mxu0 %v884
    %1932 = vmatprep.subr.bf16.mxu0 %v883
    %1933 = vmatpush1.bf16.msra.mxu0 %v882
    %1934 = vmatprep.subr.bf16.mxu0 %v881
    %1935 = vmatpush1.bf16.msra.mxu0 %v880
    %1936 = vmatprep.subr.bf16.mxu0 %v879
    %1937 = vmatpush1.bf16.msra.mxu0 %v878
    %1938 = vmatprep.subr.bf16.mxu0 %v909
    %1939 = vmatpush2.bf16.msra.mxu0 %v908
    %1940 = vmatprep.subr.bf16.mxu0 %v907
    %1941 = vmatpush2.bf16.msra.mxu0 %v906
    %1942 = vmatprep.subr.bf16.mxu0 %v905
    %1943 = vmatpush2.bf16.msra.mxu0 %v904
    %1944 = vmatprep.subr.bf16.mxu0 %v903
    %1945 = vmatpush2.bf16.msra.mxu0 %v902
    %1946 = vmatprep.subr.bf16.mxu0 %v901
    %1947 = vmatpush2.bf16.msra.mxu0 %v900
    %1948 = vmatprep.subr.bf16.mxu0 %v899
    %1949 = vmatpush2.bf16.msra.mxu0 %v898
    %1950 = vmatprep.subr.bf16.mxu0 %v897
    %1951 = vmatpush2.bf16.msra.mxu0 %v896
    %1952 = vmatprep.subr.bf16.mxu0 %v895
    %1953 = vmatpush2.bf16.msra.mxu0 %v894
    %1954 = vmatprep.mubr.bf16.mxu0 %v1878
    %1955 = vmatmul.mubr.bf16.gmra.mxu0 %v1877
    %v1956 = vpop.f32.mrf.mxu0
    %v1957 = vadd.f32 %v1916, %v1956
    %v1958 = vpop.f32.mrf.mxu0
    %v1959 = vadd.f32 %v1918, %v1958
    %v1960 = vpop.f32.mrf.mxu0
    %v1961 = vpop.f32.mrf.mxu0
    %1962 = vdwg.mxu0
    %v1963 = vadd.f32 %v1957, %v347
    %v1964 = vadd.f32 %v1959, %v351
    %v1965 = vtanh.pop %v1963
    %v1966 = vtanh.pop %v1964
    %1967 = vst [vmem:[#allocation3] sm:$0xff] %v1875
    %1968 = vst [vmem:[#allocation3 + $0x8] sm:$0xff] %v1876
    %1969 = vst [vmem:[#allocation4] sm:$0xff] %v1965
    %1970 = vst [vmem:[#allocation4 + $0x8] sm:$0xff] %v1966
  $region37: #{rnn_forward.1} parent=0 // pred_fallthru
    _
  %p1971 = scmp.gt.s32.totalorder %s356, %s354
  // Predicated region
  $region38: #{rnn_forward.1} parent=0 // pred_check
    %p1972 = pneg %p1971
  $region39: #{rnn_forward.1} parent=0 // pred_check_branch
    %1974 = sbr.rel (%p1972) target = $region41
  $region40: #{rnn_forward.1} parent=0 // pred_region
    %v1975 = vld [vmem:[#allocation3] sm:$0xff]
    %v1976 = vld [vmem:[#allocation3 + $0x8] sm:$0xff]
    %v1977 = vld [vmem:[#allocation4] sm:$0xff]
    %v1978 = vld [vmem:[#allocation4 + $0x8] sm:$0xff]
    loop: start=0, step=1, limit=8
    $region42: #{rnn_forward.1} parent=40 // loop_pre_header
      _
    $region43: #{rnn_forward.1} parent=40 // loop_header
      %s1980 = sphi 0, %s1984
      %p1981 = scmp.ge.s32.totalorder %s1980, 8
      %v1985 = vphi %v1975, %v2619
      %v1986 = vphi %v1976, %v2620
      %v1987 = vphi %v1977, %v2621
      %v1988 = vphi %v1978, %v2622
    $region44: #{rnn_forward.1} parent=40 // loop_header_branch
      %1983 = sbr.rel (%p1981) target = $region48
    $region45: #{rnn_forward.1} parent=40 // loop_body
      %s1989 = smul.u32 %s1980, 8
      %s1990 = sshra.s32 %s1989, 3
      %s1991 = sand.u32 %s1989, 7
      %s1992 = smul.u32 %s1990, 2
      %s1993 = smul.addr %s1992, 8
      %s1994 = scalar_lea.vmem [#allocation2], %s1993
      %v1995 = vld [vmem:[%s1994] sm:$0xff]
      %v1996 = vld [vmem:[%s1994 + $0x8] sm:$0xff]
      %v1997 = vpack.c.bf16 %v1985, %v1985
      %v1998 = vpack.c.bf16 %v1986, %v1986
      %v2031 = vunpack.c.l.b16 %v246
      %v2032 = vunpack.c.h.b16 %v246
      %v2033 = vunpack.c.l.b16 %v247
      %v2034 = vunpack.c.h.b16 %v247
      %v2035 = vunpack.c.l.b16 %v248
      %v2036 = vunpack.c.h.b16 %v248
      %v2037 = vunpack.c.l.b16 %v249
      %v2038 = vunpack.c.h.b16 %v249
      %v2039 = vunpack.c.l.b16 %v250
      %v2040 = vunpack.c.h.b16 %v250
      %v2041 = vunpack.c.l.b16 %v251
      %v2042 = vunpack.c.h.b16 %v251
      %v2043 = vunpack.c.l.b16 %v252
      %v2044 = vunpack.c.h.b16 %v252
      %v2045 = vunpack.c.l.b16 %v253
      %v2046 = vunpack.c.h.b16 %v253
      %v2047 = vunpack.c.l.b16 %v254
      %v2048 = vunpack.c.h.b16 %v254
      %v2049 = vunpack.c.l.b16 %v255
      %v2050 = vunpack.c.h.b16 %v255
      %v2051 = vunpack.c.l.b16 %v256
      %v2052 = vunpack.c.h.b16 %v256
      %v2053 = vunpack.c.l.b16 %v257
      %v2054 = vunpack.c.h.b16 %v257
      %v2055 = vunpack.c.l.b16 %v258
      %v2056 = vunpack.c.h.b16 %v258
      %v2057 = vunpack.c.l.b16 %v259
      %v2058 = vunpack.c.h.b16 %v259
      %v2059 = vunpack.c.l.b16 %v260
      %v2060 = vunpack.c.h.b16 %v260
      %v2061 = vunpack.c.l.b16 %v261
      %v2062 = vunpack.c.h.b16 %v261
      %v2063 = vunpack.c.l.b16 %v262
      %v2064 = vunpack.c.h.b16 %v262
      %v2065 = vunpack.c.l.b16 %v263
      %v2066 = vunpack.c.h.b16 %v263
      %v2067 = vunpack.c.l.b16 %v264
      %v2068 = vunpack.c.h.b16 %v264
      %v2069 = vunpack.c.l.b16 %v265
      %v2070 = vunpack.c.h.b16 %v265
      %v2071 = vunpack.c.l.b16 %v266
      %v2072 = vunpack.c.h.b16 %v266
      %v2073 = vunpack.c.l.b16 %v267
      %v2074 = vunpack.c.h.b16 %v267
      %v2075 = vunpack.c.l.b16 %v268
      %v2076 = vunpack.c.h.b16 %v268
      %v2077 = vunpack.c.l.b16 %v269
      %v2078 = vunpack.c.h.b16 %v269
      %v2079 = vunpack.c.l.b16 %v270
      %v2080 = vunpack.c.h.b16 %v270
      %v2081 = vunpack.c.l.b16 %v271
      %v2082 = vunpack.c.h.b16 %v271
      %v2083 = vunpack.c.l.b16 %v272
      %v2084 = vunpack.c.h.b16 %v272
      %v2085 = vunpack.c.l.b16 %v273
      %v2086 = vunpack.c.h.b16 %v273
      %v2087 = vunpack.c.l.b16 %v274
      %v2088 = vunpack.c.h.b16 %v274
      %v2089 = vunpack.c.l.b16 %v275
      %v2090 = vunpack.c.h.b16 %v275
      %v2091 = vunpack.c.l.b16 %v276
      %v2092 = vunpack.c.h.b16 %v276
      %v2093 = vunpack.c.l.b16 %v277
      %v2094 = vunpack.c.h.b16 %v277
      %v2095 = vpack.c.b16 %v2033, %v2031
      %v2096 = vpack.c.b16 %v2034, %v2032
      %v2097 = vpack.c.b16 %v2037, %v2035
      %v2098 = vpack.c.b16 %v2038, %v2036
      %v2099 = vpack.c.b16 %v2041, %v2039
      %v2100 = vpack.c.b16 %v2042, %v2040
      %v2101 = vpack.c.b16 %v2045, %v2043
      %v2102 = vpack.c.b16 %v2046, %v2044
      %v2103 = vpack.c.b16 %v2049, %v2047
      %v2104 = vpack.c.b16 %v2050, %v2048
      %v2105 = vpack.c.b16 %v2053, %v2051
      %v2106 = vpack.c.b16 %v2054, %v2052
      %v2107 = vpack.c.b16 %v2057, %v2055
      %v2108 = vpack.c.b16 %v2058, %v2056
      %v2109 = vpack.c.b16 %v2061, %v2059
      %v2110 = vpack.c.b16 %v2062, %v2060
      %v2111 = vpack.c.b16 %v2065, %v2063
      %v2112 = vpack.c.b16 %v2066, %v2064
      %v2113 = vpack.c.b16 %v2069, %v2067
      %v2114 = vpack.c.b16 %v2070, %v2068
      %v2115 = vpack.c.b16 %v2073, %v2071
      %v2116 = vpack.c.b16 %v2074, %v2072
      %v2117 = vpack.c.b16 %v2077, %v2075
      %v2118 = vpack.c.b16 %v2078, %v2076
      %v2119 = vpack.c.b16 %v2081, %v2079
      %v2120 = vpack.c.b16 %v2082, %v2080
      %v2121 = vpack.c.b16 %v2085, %v2083
      %v2122 = vpack.c.b16 %v2086, %v2084
      %v2123 = vpack.c.b16 %v2089, %v2087
      %v2124 = vpack.c.b16 %v2090, %v2088
      %v2125 = vpack.c.b16 %v2093, %v2091
      %v2126 = vpack.c.b16 %v2094, %v2092
      %2159 = vmatprep.subr.bf16.mxu0 %v2110
      %2160 = vmatpush1.bf16.msra.mxu0 %v2109
      %2161 = vmatprep.subr.bf16.mxu0 %v2108
      %2162 = vmatpush1.bf16.msra.mxu0 %v2107
      %2163 = vmatprep.subr.bf16.mxu0 %v2106
      %2164 = vmatpush1.bf16.msra.mxu0 %v2105
      %2165 = vmatprep.subr.bf16.mxu0 %v2104
      %2166 = vmatpush1.bf16.msra.mxu0 %v2103
      %2167 = vmatprep.subr.bf16.mxu0 %v2102
      %2168 = vmatpush1.bf16.msra.mxu0 %v2101
      %2169 = vmatprep.subr.bf16.mxu0 %v2100
      %2170 = vmatpush1.bf16.msra.mxu0 %v2099
      %2171 = vmatprep.subr.bf16.mxu0 %v2098
      %2172 = vmatpush1.bf16.msra.mxu0 %v2097
      %2173 = vmatprep.subr.bf16.mxu0 %v2096
      %2174 = vmatpush1.bf16.msra.mxu0 %v2095
      %2175 = vmatprep.subr.bf16.mxu0 %v2126
      %2176 = vmatpush2.bf16.msra.mxu0 %v2125
      %2177 = vmatprep.subr.bf16.mxu0 %v2124
      %2178 = vmatpush2.bf16.msra.mxu0 %v2123
      %2179 = vmatprep.subr.bf16.mxu0 %v2122
      %2180 = vmatpush2.bf16.msra.mxu0 %v2121
      %2181 = vmatprep.subr.bf16.mxu0 %v2120
      %2182 = vmatpush2.bf16.msra.mxu0 %v2119
      %2183 = vmatprep.subr.bf16.mxu0 %v2118
      %2184 = vmatpush2.bf16.msra.mxu0 %v2117
      %2185 = vmatprep.subr.bf16.mxu0 %v2116
      %2186 = vmatpush2.bf16.msra.mxu0 %v2115
      %2187 = vmatprep.subr.bf16.mxu0 %v2114
      %2188 = vmatpush2.bf16.msra.mxu0 %v2113
      %2189 = vmatprep.subr.bf16.mxu0 %v2112
      %2190 = vmatpush2.bf16.msra.mxu0 %v2111
      %2191 = vmatprep.mubr.bf16.mxu0 %v1998
      %2192 = vmatmul.mubr.bf16.gmra.mxu0 %v1997
      %v2193 = vpop.f32.mrf.mxu0
      %v2194 = vadd.f32 0.0, %v2193
      %v2195 = vpop.f32.mrf.mxu0
      %v2196 = vadd.f32 0.0, %v2195
      %v2197 = vpop.f32.mrf.mxu0
      %v2198 = vpop.f32.mrf.mxu0
      %2199 = vdwg.mxu0
      %v2200 = vadd.f32 %v1995, %v2194
      %v2201 = vadd.f32 %v1996, %v2196
      %v2202 = vtanh.pop %v2200
      %v2203 = vtanh.pop %v2201
      %v2204 = vpack.c.bf16 %v2202, %v2202
      %v2205 = vpack.c.bf16 %v2203, %v2203
      %v2206 = vpack.c.bf16 %v1987, %v1987
      %v2207 = vpack.c.bf16 %v1988, %v1988
      %v2240 = vunpack.c.l.b16 %v310
      %v2241 = vunpack.c.h.b16 %v310
      %v2242 = vunpack.c.l.b16 %v311
      %v2243 = vunpack.c.h.b16 %v311
      %v2244 = vunpack.c.l.b16 %v312
      %v2245 = vunpack.c.h.b16 %v312
      %v2246 = vunpack.c.l.b16 %v313
      %v2247 = vunpack.c.h.b16 %v313
      %v2248 = vunpack.c.l.b16 %v314
      %v2249 = vunpack.c.h.b16 %v314
      %v2250 = vunpack.c.l.b16 %v315
      %v2251 = vunpack.c.h.b16 %v315
      %v2252 = vunpack.c.l.b16 %v316
      %v2253 = vunpack.c.h.b16 %v316
      %v2254 = vunpack.c.l.b16 %v317
      %v2255 = vunpack.c.h.b16 %v317
      %v2256 = vunpack.c.l.b16 %v318
      %v2257 = vunpack.c.h.b16 %v318
      %v2258 = vunpack.c.l.b16 %v319
      %v2259 = vunpack.c.h.b16 %v319
      %v2260 = vunpack.c.l.b16 %v320
      %v2261 = vunpack.c.h.b16 %v320
      %v2262 = vunpack.c.l.b16 %v321
      %v2263 = vunpack.c.h.b16 %v321
      %v2264 = vunpack.c.l.b16 %v322
      %v2265 = vunpack.c.h.b16 %v322
      %v2266 = vunpack.c.l.b16 %v323
      %v2267 = vunpack.c.h.b16 %v323
      %v2268 = vunpack.c.l.b16 %v324
      %v2269 = vunpack.c.h.b16 %v324
      %v2270 = vunpack.c.l.b16 %v325
      %v2271 = vunpack.c.h.b16 %v325
      %v2272 = vunpack.c.l.b16 %v326
      %v2273 = vunpack.c.h.b16 %v326
      %v2274 = vunpack.c.l.b16 %v327
      %v2275 = vunpack.c.h.b16 %v327
      %v2276 = vunpack.c.l.b16 %v328
      %v2277 = vunpack.c.h.b16 %v328
      %v2278 = vunpack.c.l.b16 %v329
      %v2279 = vunpack.c.h.b16 %v329
      %v2280 = vunpack.c.l.b16 %v330
      %v2281 = vunpack.c.h.b16 %v330
      %v2282 = vunpack.c.l.b16 %v331
      %v2283 = vunpack.c.h.b16 %v331
      %v2284 = vunpack.c.l.b16 %v332
      %v2285 = vunpack.c.h.b16 %v332
      %v2286 = vunpack.c.l.b16 %v333
      %v2287 = vunpack.c.h.b16 %v333
      %v2288 = vunpack.c.l.b16 %v334
      %v2289 = vunpack.c.h.b16 %v334
      %v2290 = vunpack.c.l.b16 %v335
      %v2291 = vunpack.c.h.b16 %v335
      %v2292 = vunpack.c.l.b16 %v336
      %v2293 = vunpack.c.h.b16 %v336
      %v2294 = vunpack.c.l.b16 %v337
      %v2295 = vunpack.c.h.b16 %v337
      %v2296 = vunpack.c.l.b16 %v338
      %v2297 = vunpack.c.h.b16 %v338
      %v2298 = vunpack.c.l.b16 %v339
      %v2299 = vunpack.c.h.b16 %v339
      %v2300 = vunpack.c.l.b16 %v340
      %v2301 = vunpack.c.h.b16 %v340
      %v2302 = vunpack.c.l.b16 %v341
      %v2303 = vunpack.c.h.b16 %v341
      %v2304 = vpack.c.b16 %v2242, %v2240
      %v2305 = vpack.c.b16 %v2243, %v2241
      %v2306 = vpack.c.b16 %v2246, %v2244
      %v2307 = vpack.c.b16 %v2247, %v2245
      %v2308 = vpack.c.b16 %v2250, %v2248
      %v2309 = vpack.c.b16 %v2251, %v2249
      %v2310 = vpack.c.b16 %v2254, %v2252
      %v2311 = vpack.c.b16 %v2255, %v2253
      %v2312 = vpack.c.b16 %v2258, %v2256
      %v2313 = vpack.c.b16 %v2259, %v2257
      %v2314 = vpack.c.b16 %v2262, %v2260
      %v2315 = vpack.c.b16 %v2263, %v2261
      %v2316 = vpack.c.b16 %v2266, %v2264
      %v2317 = vpack.c.b16 %v2267, %v2265
      %v2318 = vpack.c.b16 %v2270, %v2268
      %v2319 = vpack.c.b16 %v2271, %v2269
      %v2320 = vpack.c.b16 %v2274, %v2272
      %v2321 = vpack.c.b16 %v2275, %v2273
      %v2322 = vpack.c.b16 %v2278, %v2276
      %v2323 = vpack.c.b16 %v2279, %v2277
      %v2324 = vpack.c.b16 %v2282, %v2280
      %v2325 = vpack.c.b16 %v2283, %v2281
      %v2326 = vpack.c.b16 %v2286, %v2284
      %v2327 = vpack.c.b16 %v2287, %v2285
      %v2328 = vpack.c.b16 %v2290, %v2288
      %v2329 = vpack.c.b16 %v2291, %v2289
      %v2330 = vpack.c.b16 %v2294, %v2292
      %v2331 = vpack.c.b16 %v2295, %v2293
      %v2332 = vpack.c.b16 %v2298, %v2296
      %v2333 = vpack.c.b16 %v2299, %v2297
      %v2334 = vpack.c.b16 %v2302, %v2300
      %v2335 = vpack.c.b16 %v2303, %v2301
      %2368 = vmatprep.subr.bf16.mxu0 %v2319
      %2369 = vmatpush1.bf16.msra.mxu0 %v2318
      %2370 = vmatprep.subr.bf16.mxu0 %v2317
      %2371 = vmatpush1.bf16.msra.mxu0 %v2316
      %2372 = vmatprep.subr.bf16.mxu0 %v2315
      %2373 = vmatpush1.bf16.msra.mxu0 %v2314
      %2374 = vmatprep.subr.bf16.mxu0 %v2313
      %2375 = vmatpush1.bf16.msra.mxu0 %v2312
      %2376 = vmatprep.subr.bf16.mxu0 %v2311
      %2377 = vmatpush1.bf16.msra.mxu0 %v2310
      %2378 = vmatprep.subr.bf16.mxu0 %v2309
      %2379 = vmatpush1.bf16.msra.mxu0 %v2308
      %2380 = vmatprep.subr.bf16.mxu0 %v2307
      %2381 = vmatpush1.bf16.msra.mxu0 %v2306
      %2382 = vmatprep.subr.bf16.mxu0 %v2305
      %2383 = vmatpush1.bf16.msra.mxu0 %v2304
      %2384 = vmatprep.subr.bf16.mxu0 %v2335
      %2385 = vmatpush2.bf16.msra.mxu0 %v2334
      %2386 = vmatprep.subr.bf16.mxu0 %v2333
      %2387 = vmatpush2.bf16.msra.mxu0 %v2332
      %2388 = vmatprep.subr.bf16.mxu0 %v2331
      %2389 = vmatpush2.bf16.msra.mxu0 %v2330
      %2390 = vmatprep.subr.bf16.mxu0 %v2329
      %2391 = vmatpush2.bf16.msra.mxu0 %v2328
      %2392 = vmatprep.subr.bf16.mxu0 %v2327
      %2393 = vmatpush2.bf16.msra.mxu0 %v2326
      %2394 = vmatprep.subr.bf16.mxu0 %v2325
      %2395 = vmatpush2.bf16.msra.mxu0 %v2324
      %2396 = vmatprep.subr.bf16.mxu0 %v2323
      %2397 = vmatpush2.bf16.msra.mxu0 %v2322
      %2398 = vmatprep.subr.bf16.mxu0 %v2321
      %2399 = vmatpush2.bf16.msra.mxu0 %v2320
      %2400 = vmatprep.mubr.bf16.mxu0 %v2207
      %2401 = vmatmul.mubr.bf16.gmra.mxu0 %v2206
      %v2402 = vpop.f32.mrf.mxu0
      %v2403 = vadd.f32 0.0, %v2402
      %v2404 = vpop.f32.mrf.mxu0
      %v2405 = vadd.f32 0.0, %v2404
      %v2406 = vpop.f32.mrf.mxu0
      %v2407 = vpop.f32.mrf.mxu0
      %2408 = vdwg.mxu0
      %v2441 = vunpack.c.l.b16 %v278
      %v2442 = vunpack.c.h.b16 %v278
      %v2443 = vunpack.c.l.b16 %v279
      %v2444 = vunpack.c.h.b16 %v279
      %v2445 = vunpack.c.l.b16 %v280
      %v2446 = vunpack.c.h.b16 %v280
      %v2447 = vunpack.c.l.b16 %v281
      %v2448 = vunpack.c.h.b16 %v281
      %v2449 = vunpack.c.l.b16 %v282
      %v2450 = vunpack.c.h.b16 %v282
      %v2451 = vunpack.c.l.b16 %v283
      %v2452 = vunpack.c.h.b16 %v283
      %v2453 = vunpack.c.l.b16 %v284
      %v2454 = vunpack.c.h.b16 %v284
      %v2455 = vunpack.c.l.b16 %v285
      %v2456 = vunpack.c.h.b16 %v285
      %v2457 = vunpack.c.l.b16 %v286
      %v2458 = vunpack.c.h.b16 %v286
      %v2459 = vunpack.c.l.b16 %v287
      %v2460 = vunpack.c.h.b16 %v287
      %v2461 = vunpack.c.l.b16 %v288
      %v2462 = vunpack.c.h.b16 %v288
      %v2463 = vunpack.c.l.b16 %v289
      %v2464 = vunpack.c.h.b16 %v289
      %v2465 = vunpack.c.l.b16 %v290
      %v2466 = vunpack.c.h.b16 %v290
      %v2467 = vunpack.c.l.b16 %v291
      %v2468 = vunpack.c.h.b16 %v291
      %v2469 = vunpack.c.l.b16 %v292
      %v2470 = vunpack.c.h.b16 %v292
      %v2471 = vunpack.c.l.b16 %v293
      %v2472 = vunpack.c.h.b16 %v293
      %v2473 = vunpack.c.l.b16 %v294
      %v2474 = vunpack.c.h.b16 %v294
      %v2475 = vunpack.c.l.b16 %v295
      %v2476 = vunpack.c.h.b16 %v295
      %v2477 = vunpack.c.l.b16 %v296
      %v2478 = vunpack.c.h.b16 %v296
      %v2479 = vunpack.c.l.b16 %v297
      %v2480 = vunpack.c.h.b16 %v297
      %v2481 = vunpack.c.l.b16 %v298
      %v2482 = vunpack.c.h.b16 %v298
      %v2483 = vunpack.c.l.b16 %v299
      %v2484 = vunpack.c.h.b16 %v299
      %v2485 = vunpack.c.l.b16 %v300
      %v2486 = vunpack.c.h.b16 %v300
      %v2487 = vunpack.c.l.b16 %v301
      %v2488 = vunpack.c.h.b16 %v301
      %v2489 = vunpack.c.l.b16 %v302
      %v2490 = vunpack.c.h.b16 %v302
      %v2491 = vunpack.c.l.b16 %v303
      %v2492 = vunpack.c.h.b16 %v303
      %v2493 = vunpack.c.l.b16 %v304
      %v2494 = vunpack.c.h.b16 %v304
      %v2495 = vunpack.c.l.b16 %v305
      %v2496 = vunpack.c.h.b16 %v305
      %v2497 = vunpack.c.l.b16 %v306
      %v2498 = vunpack.c.h.b16 %v306
      %v2499 = vunpack.c.l.b16 %v307
      %v2500 = vunpack.c.h.b16 %v307
      %v2501 = vunpack.c.l.b16 %v308
      %v2502 = vunpack.c.h.b16 %v308
      %v2503 = vunpack.c.l.b16 %v309
      %v2504 = vunpack.c.h.b16 %v309
      %v2505 = vpack.c.b16 %v2443, %v2441
      %v2506 = vpack.c.b16 %v2444, %v2442
      %v2507 = vpack.c.b16 %v2447, %v2445
      %v2508 = vpack.c.b16 %v2448, %v2446
      %v2509 = vpack.c.b16 %v2451, %v2449
      %v2510 = vpack.c.b16 %v2452, %v2450
      %v2511 = vpack.c.b16 %v2455, %v2453
      %v2512 = vpack.c.b16 %v2456, %v2454
      %v2513 = vpack.c.b16 %v2459, %v2457
      %v2514 = vpack.c.b16 %v2460, %v2458
      %v2515 = vpack.c.b16 %v2463, %v2461
      %v2516 = vpack.c.b16 %v2464, %v2462
      %v2517 = vpack.c.b16 %v2467, %v2465
      %v2518 = vpack.c.b16 %v2468, %v2466
      %v2519 = vpack.c.b16 %v2471, %v2469
      %v2520 = vpack.c.b16 %v2472, %v2470
      %v2521 = vpack.c.b16 %v2475, %v2473
      %v2522 = vpack.c.b16 %v2476, %v2474
      %v2523 = vpack.c.b16 %v2479, %v2477
      %v2524 = vpack.c.b16 %v2480, %v2478
      %v2525 = vpack.c.b16 %v2483, %v2481
      %v2526 = vpack.c.b16 %v2484, %v2482
      %v2527 = vpack.c.b16 %v2487, %v2485
      %v2528 = vpack.c.b16 %v2488, %v2486
      %v2529 = vpack.c.b16 %v2491, %v2489
      %v2530 = vpack.c.b16 %v2492, %v2490
      %v2531 = vpack.c.b16 %v2495, %v2493
      %v2532 = vpack.c.b16 %v2496, %v2494
      %v2533 = vpack.c.b16 %v2499, %v2497
      %v2534 = vpack.c.b16 %v2500, %v2498
      %v2535 = vpack.c.b16 %v2503, %v2501
      %v2536 = vpack.c.b16 %v2504, %v2502
      %2569 = vmatprep.subr.bf16.mxu0 %v2520
      %2570 = vmatpush1.bf16.msra.mxu0 %v2519
      %2571 = vmatprep.subr.bf16.mxu0 %v2518
      %2572 = vmatpush1.bf16.msra.mxu0 %v2517
      %2573 = vmatprep.subr.bf16.mxu0 %v2516
      %2574 = vmatpush1.bf16.msra.mxu0 %v2515
      %2575 = vmatprep.subr.bf16.mxu0 %v2514
      %2576 = vmatpush1.bf16.msra.mxu0 %v2513
      %2577 = vmatprep.subr.bf16.mxu0 %v2512
      %2578 = vmatpush1.bf16.msra.mxu0 %v2511
      %2579 = vmatprep.subr.bf16.mxu0 %v2510
      %2580 = vmatpush1.bf16.msra.mxu0 %v2509
      %2581 = vmatprep.subr.bf16.mxu0 %v2508
      %2582 = vmatpush1.bf16.msra.mxu0 %v2507
      %2583 = vmatprep.subr.bf16.mxu0 %v2506
      %2584 = vmatpush1.bf16.msra.mxu0 %v2505
      %2585 = vmatprep.subr.bf16.mxu0 %v2536
      %2586 = vmatpush2.bf16.msra.mxu0 %v2535
      %2587 = vmatprep.subr.bf16.mxu0 %v2534
      %2588 = vmatpush2.bf16.msra.mxu0 %v2533
      %2589 = vmatprep.subr.bf16.mxu0 %v2532
      %2590 = vmatpush2.bf16.msra.mxu0 %v2531
      %2591 = vmatprep.subr.bf16.mxu0 %v2530
      %2592 = vmatpush2.bf16.msra.mxu0 %v2529
      %2593 = vmatprep.subr.bf16.mxu0 %v2528
      %2594 = vmatpush2.bf16.msra.mxu0 %v2527
      %2595 = vmatprep.subr.bf16.mxu0 %v2526
      %2596 = vmatpush2.bf16.msra.mxu0 %v2525
      %2597 = vmatprep.subr.bf16.mxu0 %v2524
      %2598 = vmatpush2.bf16.msra.mxu0 %v2523
      %2599 = vmatprep.subr.bf16.mxu0 %v2522
      %2600 = vmatpush2.bf16.msra.mxu0 %v2521
      %2601 = vmatprep.mubr.bf16.mxu0 %v2205
      %2602 = vmatmul.mubr.bf16.gmra.mxu0 %v2204
      %v2603 = vpop.f32.mrf.mxu0
      %v2604 = vadd.f32 %v2403, %v2603
      %v2605 = vpop.f32.mrf.mxu0
      %v2606 = vadd.f32 %v2405, %v2605
      %v2607 = vpop.f32.mrf.mxu0
      %v2608 = vpop.f32.mrf.mxu0
      %2609 = vdwg.mxu0
      %v2610 = vadd.f32 %v2604, %v347
      %v2611 = vadd.f32 %v2606, %v351
      %v2612 = vtanh.pop %v2610
      %v2613 = vtanh.pop %v2611
      %s2614 = sadd.s32 %s355, %s1980
      %p2615 = scmp.lt.s32.totalorder %s2614, %s354
      %s2616 = scalar_select %p2615, 1, 0
      %v2617 = vstv %s2616
      %vm2618 = vcmp.eq.s32.totalorder %v2617, 1
      %v2619 = vsel %vm2618, %v2202, %v1985
      %v2620 = vsel %vm2618, %v2203, %v1986
      %v2621 = vsel %vm2618, %v2612, %v1987
      %v2622 = vsel %vm2618, %v2613, %v1988
    $region46: #{rnn_forward.1} parent=40 // loop_footer
      %s1984 = sadd.s32 1, %s1980
    $region47: #{rnn_forward.1} parent=40 // loop_footer_branch
      %1979 = sbr.rel target = $region43
    $region48: #{rnn_forward.1} parent=40 // loop_exit
      _
    %2623 = vst [vmem:[#allocation3] sm:$0xff] %v1985
    %2624 = vst [vmem:[#allocation3 + $0x8] sm:$0xff] %v1986
    %2625 = vst [vmem:[#allocation4] sm:$0xff] %v1987
    %2626 = vst [vmem:[#allocation4 + $0x8] sm:$0xff] %v1988
  $region41: #{rnn_forward.1} parent=0 // pred_fallthru
    _
  // Predicated region
  $region49: #{rnn_forward.1} parent=0 // pred_check
    %p2627 = pneg %p29
  $region50: #{rnn_forward.1} parent=0 // pred_check_branch
    %2629 = sbr.rel (%p2627) target = $region52
  $region51: #{rnn_forward.1} parent=0 // pred_region
    %v2630 = vld [vmem:[#allocation4] sm:$0xff]
    %v2631 = vld [vmem:[#allocation4 + $0x8] sm:$0xff]
    %2632 = vst [vmem:[%s8] sm:$0xff] %v2630
    %2633 = vst [vmem:[%s8 + $0x8] sm:$0xff] %v2631
  $region52: #{rnn_forward.1} parent=0 // pred_fallthru
    _
  // Predicated region
  $region53: #{rnn_forward.1} parent=0 // pred_check
    _
  $region54: #{rnn_forward.1} parent=0 // pred_check_branch
    %2635 = sbr.rel (0) target = $region56
  $region55: #{rnn_forward.1} parent=0 // pred_region
    _
  $region56: #{rnn_forward.1} parent=0 // pred_fallthru
    _
  // Predicated region
  $region57: #{rnn_forward.1} parent=0 // pred_check
    _
  $region58: #{rnn_forward.1} parent=0 // pred_check_branch
    %2637 = sbr.rel (0) target = $region60
  $region59: #{rnn_forward.1} parent=0 // pred_region
    _
  $region60: #{rnn_forward.1} parent=0 // pred_fallthru
    _

</llo_original>
